<compile_context>
chip_gen: v5e
topology: v5e:2x2
jax: 0.10.0
libtpu: 0.0.40
codegen_flags: <defaults>
</compile_context>

<pallas_src>
import functools

import jax
import jax.numpy as jnp
from jax.experimental import pallas as pl
from jax.experimental.pallas import tpu as pltpu

LANE = 128          # TPU lane width; all channel dims are padded to this
NEG_SLOPE = 0.2     # LeakyReLU slope used everywhere in the module


# ----------------------------------------------------------------------------
# Fused Pallas kernel: textModel + infoModel + combineModel
# ----------------------------------------------------------------------------
def multitask_kernel(x0_ref, info_ref, conv_w_ref, conv_st_ref,
                     dense_w_ref, vec_ref, out_ref, *,
                     B, L, K, pad, tap, conv_post, conv_res, info_act):
    R = B * L
    CP = LANE
    n_conv = len(conv_post)
    n_info = len(info_act)

    def leaky(v):
        return jnp.where(v >= 0, v, NEG_SLOPE * v)

    # Hoisted conv boundary masks: iota/mod/compare are emitted ONCE, not per
    # layer/tap (JAX does not CSE broadcast_in_dim).
    pos = jax.lax.broadcasted_iota(jnp.int32, (R, CP), 0) % L
    offs = [t - pad for t in range(K)]
    valid = {off: jnp.logical_and(pos + off >= 0, pos + off <= L - 1)
             for off in offs if off != 0}

    def shifted(x, off):
        # Row r -> x[r + off] when position (r % L) + off stays inside the
        # sequence, else 0.  pltpu.roll rides the XLU slot; the mask implements
        # the conv zero-padding AND blocks cross-batch leakage in the flattened
        # (B*L, C) layout (wrapped rows are always masked off).
        if off == 0:
            return x
        rolled = pltpu.roll(x, shift=(-off) % R, axis=0)
        return jnp.where(valid[off], rolled, jnp.zeros_like(rolled))

    # ---------------- textModel: gated conv stack (VMEM-resident) ------------
    x = x0_ref[...].astype(jnp.float32)               # (B*L, 128)
    for li in range(n_conv):                          # static unroll, few layers
        # Lane-packed im2col: tap t occupies lanes [t*tap, t*tap + tap); a
        # single (R,128)x(128,256) MXU pass covers both gate branches.  The
        # lane-roll wrap lanes are zero because x's padded lanes are exactly
        # zero (asserted in pack_params).
        xk = shifted(x, offs[0])
        for t in range(1, K):
            xk = xk + pltpu.roll(shifted(x, offs[t]), shift=t * tap, axis=1)
        y = jnp.dot(xk.astype(jnp.bfloat16), conv_w_ref[li],
                    preferred_element_type=jnp.float32)          # (R, 256)
        y = (y * conv_st_ref[2 * li:2 * li + 1, :]
             + conv_st_ref[2 * li + 1:2 * li + 2, :])            # bias+BN folded
        if conv_post[li]:                             # BN + LeakyReLU blocks only
            y = leaky(y)
        g = y[:, :CP] * jax.nn.sigmoid(y[:, CP:])     # value * sigmoid(gate)
        if conv_res[li]:                              # residual iff Cin == Cout
            g = g + x
        x = g

    # Sequence sum feeds the text FC directly: O(1) in B, no per-batch Python
    # slices, no [B,L,C] HBM round trip.
    s = jnp.sum(x.reshape(B, L, CP), axis=1)          # (B, 128)
    text_out = jnp.dot(s.astype(jnp.bfloat16), dense_w_ref[0],
                       preferred_element_type=jnp.float32) + vec_ref[0:1, :]

    # ---------------- infoModel: Linear/BN/LeakyReLU MLP ---------------------
    z = info_ref[...]                                 # (B, 128) f32
    for li in range(n_info):
        z = jnp.dot(z.astype(jnp.bfloat16), dense_w_ref[1 + li],
                    preferred_element_type=jnp.float32)
        z = (z * vec_ref[1 + li:2 + li, :]
             + vec_ref[1 + n_info + li:2 + n_info + li, :])
        if info_act[li]:
            z = leaky(z)

    # ---------------- combineModel (two 128-wide dots, no lane concat) -------
    i_cs = 1 + 2 * n_info
    h = (jnp.dot(text_out.astype(jnp.bfloat16), dense_w_ref[1 + n_info],
                 preferred_element_type=jnp.float32)
         + jnp.dot(z.astype(jnp.bfloat16), dense_w_ref[2 + n_info],
                   preferred_element_type=jnp.float32))
    h = leaky(h * vec_ref[i_cs:i_cs + 1, :] + vec_ref[i_cs + 1:i_cs + 2, :])
    o = jnp.dot(h.astype(jnp.bfloat16), dense_w_ref[3 + n_info],
                preferred_element_type=jnp.float32) + vec_ref[i_cs + 2:i_cs + 3, :]
    out_ref[...] = o.astype(out_ref.dtype)            # (B, 128), lane-dense


# ----------------------------------------------------------------------------
# Glue: padding / BN folding / weight packing, and the pallas_call wrapper
# ----------------------------------------------------------------------------
_VMEM = pl.BlockSpec(memory_space=pltpu.MemorySpace.VMEM)


def _pad_axis(x, size, axis):
    if x.shape[axis] == size:
        return x
    pads = [(0, 0)] * x.ndim
    pads[axis] = (0, size - x.shape[axis])
    return jnp.pad(x, pads)


def _fold_bn(gamma, beta, mean, var, bias, eps=1e-5):
    # (conv_or_linear_out + bias) * scale + shift_bn  ==  out * scale + shift
    scale = gamma / jnp.sqrt(var + eps)
    shift = beta - mean * scale + bias * scale
    return scale, shift


def _assert_zero_tail(vec, n_real, name):
    # Padded lanes of additive shifts must be exactly zero, otherwise padded
    # activation lanes become non-zero and the lane-packed im2col roll/add (and
    # the residual chain) would leak them into real channels.
    if vec.shape[-1] > n_real:
        assert not bool(jnp.any(vec[..., n_real:] != 0)), \
            f"non-zero padded lanes in {name}"


def pack_params(params, *, kernel_size):
    """Pad to 128 lanes, fold biases/BN, lane-pack conv taps, stack weights."""
    K = kernel_size
    layers = params["conv_layers"]
    tap = max(l["wa"].shape[1] for l in layers)   # padded per-tap lane width
    # TODO(synk): if K * tap > LANE the lane-packed im2col no longer fits one
    # 128-lane tile; fall back to K separate (R,128)x(128,256) accumulated dots.
    assert K * tap <= LANE, (K, tap)

    conv_w, conv_st, conv_post, conv_res = [], [], [], []
    for layer in layers:
        wa, ba, wb, bb = layer["wa"], layer["ba"], layer["wb"], layer["bb"]
        cin, cout = wa.shape[1], wa.shape[2]
        if "bn_a" in layer:
            sa, ta = _fold_bn(*layer["bn_a"], bias=ba)
            sb, tb = _fold_bn(*layer["bn_b"], bias=bb)
            conv_post.append(True)
        else:                               # first block: plain Conv1d
            sa, ta = jnp.ones_like(ba), ba
            sb, tb = jnp.ones_like(bb), bb
            conv_post.append(False)
        conv_res.append(cin == cout)        # residual-shape check of the module
        # (K, Cin, Cout) -> lane-packed (128, 2*128): row t*tap + c is tap t /
        # input channel c; columns [0:128) value branch, [128:256) gate branch.
        wa_p = _pad_axis(_pad_axis(wa, tap, 1), LANE, 2)
        wb_p = _pad_axis(_pad_axis(wb, tap, 1), LANE, 2)
        w = jnp.concatenate([wa_p, wb_p], axis=2).reshape(K * tap, 2 * LANE)
        conv_w.append(_pad_axis(w, LANE, 0))
        sa_p, sb_p = _pad_axis(sa, LANE, 0), _pad_axis(sb, LANE, 0)
        ta_p, tb_p = _pad_axis(ta, LANE, 0), _pad_axis(tb, LANE, 0)
        _assert_zero_tail(ta_p, cout, "conv value shift")
        _assert_zero_tail(tb_p, cout, "conv gate shift")
        conv_st.append(jnp.concatenate([sa_p, sb_p]))   # scale row (256,)
        conv_st.append(jnp.concatenate([ta_p, tb_p]))   # shift row (256,)

    # dense bf16 (128,128) weight stack: [fc, info_0..3, cw1_text, cw1_info, cw2]
    # f32 vec stack: [fc_b, info_s*, info_t*, c_s, c_t, cb2]
    dense_w, vec = [], []
    fc_w, fc_b = params["fc_w"], params["fc_b"]
    text_dim = fc_w.shape[1]
    dense_w.append(_pad_axis(_pad_axis(fc_w, LANE, 0), LANE, 1))
    fc_b_p = _pad_axis(fc_b, LANE, 0)
    _assert_zero_tail(fc_b_p, text_dim, "fc bias")
    vec.append(fc_b_p)

    info_act, info_t_rows = [], []
    for i, (w, b) in enumerate(zip(params["info_w"], params["info_b"])):
        dense_w.append(_pad_axis(_pad_axis(w, LANE, 0), LANE, 1))
        if i < len(params["info_bn"]):
            s, t = _fold_bn(*params["info_bn"][i], bias=b)
            info_act.append(True)
        else:
            s, t = jnp.ones_like(b), b
            info_act.append(False)
        t_p = _pad_axis(t, LANE, 0)
        _assert_zero_tail(t_p, w.shape[1], f"info shift {i}")
        vec.append(_pad_axis(s, LANE, 0))
        info_t_rows.append(t_p)
    vec.extend(info_t_rows)

    # combineModel: first Linear split into text/info blocks so the kernel can
    # consume the two 128-padded halves with two dots (no lane-axis concat).
    cw1 = params["cw1"]
    dense_w.append(_pad_axis(_pad_axis(cw1[:text_dim], LANE, 0), LANE, 1))
    dense_w.append(_pad_axis(_pad_axis(cw1[text_dim:], LANE, 0), LANE, 1))
    dense_w.append(_pad_axis(_pad_axis(params["cw2"], LANE, 0), LANE, 1))
    c_s, c_t = _fold_bn(*params["c_bn"], bias=params["cb1"])
    c_t_p = _pad_axis(c_t, LANE, 0)
    cb2_p = _pad_axis(params["cb2"], LANE, 0)
    _assert_zero_tail(c_t_p, cw1.shape[1], "combine shift")
    _assert_zero_tail(cb2_p, params["cw2"].shape[1], "combine out bias")
    vec.extend([_pad_axis(c_s, LANE, 0), c_t_p, cb2_p])

    return dict(
        emb=_pad_axis(params["emb"], LANE, 1).astype(jnp.bfloat16),  # lane-dense
        conv_w=jnp.stack(conv_w).astype(jnp.bfloat16),       # (n_conv, 128, 256)
        conv_st=jnp.stack(conv_st).astype(jnp.float32),      # (2*n_conv, 256)
        dense_w=jnp.stack(dense_w).astype(jnp.bfloat16),     # (4+n_info, 128, 128)
        vec=jnp.stack(vec).astype(jnp.float32),              # (4+2*n_info, 128)
        tap=tap,
        conv_post=tuple(conv_post),
        conv_res=tuple(conv_res),
        info_act=tuple(info_act),
    )


def multitask_forward(tokens, extra_info, packed, *, kernel_size, pad):
    B, L = tokens.shape
    # TODO(synk): embedding-table gather stays in XLA glue (a scalar-prefetch DMA
    # gather is possible but not worthwhile at these sizes).  The table is
    # pre-padded to 128 lanes and stored bf16, so the gather result is already a
    # lane-dense bf16 slab (no host-side pad/cast, half the x0 DMA bytes).
    x0 = packed["emb"][tokens].reshape(B * L, LANE)                # (B*L,128) bf16
    info_in = _pad_axis(extra_info.astype(jnp.float32), LANE, 1)   # (B,128) f32

    kern = functools.partial(
        multitask_kernel, B=B, L=L, K=kernel_size, pad=pad, tap=packed["tap"],
        conv_post=packed["conv_post"], conv_res=packed["conv_res"],
        info_act=packed["info_act"])

    # Single grid point: the whole forward is one fused kernel, activations stay
    # in VMEM.  TODO(synk): for large B*L add a row grid over B*L/TILE_R with
    # dimension_semantics=("parallel",) (needed to use both TCs on v7x) and size
    # TILE_R against v7x's 64 MiB VMEM (not v5e/v6e's 128 MiB), setting
    # vmem_limit_bytes explicitly.
    out = pl.pallas_call(
        kern,
        out_shape=jax.ShapeDtypeStruct((B, LANE), jnp.float32),
        in_specs=[_VMEM] * 6,
        out_specs=_VMEM,
    )(x0, info_in, packed["conv_w"], packed["conv_st"],
      packed["dense_w"], packed["vec"])
    return out[:, :1]          # combineModel ends in Linear(combine_dim, 1)


# ----------------------------------------------------------------------------
# Pure-JAX f32 reference (independent check of the full MultiTaskModel forward)
# ----------------------------------------------------------------------------
def reference_forward(tokens, extra_info, params, *, pad, eps=1e-5):
    def leaky(v):
        return jnp.where(v >= 0, v, NEG_SLOPE * v)

    # textModel (gated CNN)
    x = params["emb"][tokens]
    for layer in params["conv_layers"]:
        res = x

        def branch(w, b, bn):
            y = jax.lax.conv_general_dilated(
                x, w, window_strides=(1,), padding=[(pad, pad)],
                dimension_numbers=("NWC", "WIO", "NWC")) + b
            if bn is not None:
                gamma, beta, mean, var = bn
                y = (y - mean) / jnp.sqrt(var + eps) * gamma + beta
                y = leaky(y)
            return y

        a = branch(layer["wa"], layer["ba"], layer.get("bn_a"))
        g = branch(layer["wb"], layer["bb"], layer.get("bn_b"))
        xn = a * jax.nn.sigmoid(g)
        if res.shape[-1] == xn.shape[-1]:
            xn = xn + res
        x = xn
    text_out = x.sum(axis=1) @ params["fc_w"] + params["fc_b"]

    # infoModel
    z = extra_info
    for i, (w, b) in enumerate(zip(params["info_w"], params["info_b"])):
        z = z @ w + b
        if i < len(params["info_bn"]):
            gamma, beta, mean, var = params["info_bn"][i]
            z = (z - mean) / jnp.sqrt(var + eps) * gamma + beta
            z = leaky(z)
    info_out = z

    # combineModel
    c = jnp.concatenate([text_out, info_out], axis=1)
    h = c @ params["cw1"] + params["cb1"]
    gamma, beta, mean, var = params["c_bn"]
    h = leaky((h - mean) / jnp.sqrt(var + eps) * gamma + beta)
    return h @ params["cw2"] + params["cb2"]


# ----------------------------------------------------------------------------
# Deterministic synthetic parameters (mirrors the nn.Module __init__ structure)
# ----------------------------------------------------------------------------
class _Keys:
    """Lazy PRNG key splitter — cannot run out of keys."""

    def __init__(self, key):
        self._key = key

    def __call__(self):
        self._key, sub = jax.random.split(self._key)
        return sub


def make_params(key, *, vocab, emb_dim, conv_dim, n_extra_conv, kernel_size,
                text_out_dim, num_features, fc_hidden, info_out_dim, combine_dim):
    kg = _Keys(key)

    def nrm(shape, scale=0.1):
        return scale * jax.random.normal(kg(), shape, jnp.float32)

    def bn(c):
        gamma = 1.0 + nrm((c,))
        beta = nrm((c,))
        mean = nrm((c,))
        var = 1.0 + jnp.abs(nrm((c,)))
        return gamma, beta, mean, var

    # textModel (gated CNN): first block plain Conv1d, later blocks Conv+BN+LeakyReLU
    conv_layers = [dict(wa=nrm((kernel_size, emb_dim, conv_dim)), ba=nrm((conv_dim,)),
                        wb=nrm((kernel_size, emb_dim, conv_dim)), bb=nrm((conv_dim,)))]
    for _ in range(n_extra_conv):
        conv_layers.append(dict(
            wa=nrm((kernel_size, conv_dim, conv_dim)), ba=nrm((conv_dim,)),
            wb=nrm((kernel_size, conv_dim, conv_dim)), bb=nrm((conv_dim,)),
            bn_a=bn(conv_dim), bn_b=bn(conv_dim)))

    # infoModel: (F-1) -> 2H -> 2H -> H -> info_out, BN+LeakyReLU after first three
    dims = [num_features - 1, 2 * fc_hidden, 2 * fc_hidden, fc_hidden, info_out_dim]
    info_w = [nrm((dims[i], dims[i + 1])) for i in range(4)]
    info_b = [nrm((dims[i + 1],)) for i in range(4)]
    info_bn = [bn(dims[i + 1]) for i in range(3)]

    return dict(
        emb=nrm((vocab, emb_dim)),
        conv_layers=conv_layers,
        fc_w=nrm((conv_dim, text_out_dim)), fc_b=nrm((text_out_dim,)),
        info_w=info_w, info_b=info_b, info_bn=info_bn,
        cw1=nrm((text_out_dim + info_out_dim, combine_dim)), cb1=nrm((combine_dim,)),
        c_bn=bn(combine_dim),
        cw2=nrm((combine_dim, 1)), cb2=nrm((1,)),
    )


# ----------------------------------------------------------------------------
if __name__ == "__main__":
    # small hyper-parameters consistent with the module's forward
    VOCAB, EMB, CONV = 50, 16, 32
    N_EXTRA_CONV, KERNEL, PAD = 2, 3, 1          # stride=1, pad=(K-1)//2 (residual)
    TEXT_OUT, NUM_FEATURES, FC_HIDDEN, INFO_OUT, COMBINE = 8, 8, 16, 8, 16
    B, L = 2, 8
    # TODO(synk): the `length` argument of MultiTaskModel.forward is ignored by
    # this textModel (no packed-sequence handling needed for the conv encoder).

    key = jax.random.PRNGKey(0)
    k_tok, k_info, k_par = jax.random.split(key, 3)
    tokens = jax.random.randint(k_tok, (B, L), 0, VOCAB, dtype=jnp.int32)
    extra_info = 0.5 * jax.random.normal(k_info, (B, NUM_FEATURES - 1), jnp.float32)

    params = make_params(k_par, vocab=VOCAB, emb_dim=EMB, conv_dim=CONV,
                         n_extra_conv=N_EXTRA_CONV, kernel_size=KERNEL,
                         text_out_dim=TEXT_OUT, num_features=NUM_FEATURES,
                         fc_hidden=FC_HIDDEN, info_out_dim=INFO_OUT,
                         combine_dim=COMBINE)
    packed = pack_params(params, kernel_size=KERNEL)

    out = multitask_forward(tokens, extra_info, packed, kernel_size=KERNEL, pad=PAD)
    out = jax.block_until_ready(out)

    ref = reference_forward(tokens, extra_info, params, pad=PAD)
    assert out.shape == (B, 1), out.shape
    # bf16 MXU operands / bf16 embedding vs f32 reference -> modest tolerance
    assert jnp.allclose(out, ref, atol=5e-2, rtol=5e-2), (out, ref)

    print("KERNEL_OK")
</pallas_src>

<mosaic_0001>
module attributes {stable_mosaic.version = 11 : i64} {
  func.func @multitask_kernel(%arg0: memref<16x128xbf16, #tpu.memory_space<vmem>>, %arg1: memref<2x128xf32, #tpu.memory_space<vmem>>, %arg2: memref<3x128x256xbf16, #tpu.memory_space<vmem>>, %arg3: memref<6x256xf32, #tpu.memory_space<vmem>>, %arg4: memref<8x128x128xbf16, #tpu.memory_space<vmem>>, %arg5: memref<12x128xf32, #tpu.memory_space<vmem>>, %arg6: memref<2x128xf32, #tpu.memory_space<vmem>>) attributes {dimension_semantics = [], scalar_prefetch = 0 : i64, scratch_operands = 0 : i64, tpu.core_type = #tpu.core_type<tc>} {
    %0 = tpu.iota {dimensions = array<i32: 0>} : vector<16x128xi32>
    %c8_i32 = arith.constant 8 : i32
    %c0_i32 = arith.constant 0 : i32
    %1 = arith.cmpi eq, %c8_i32, %c0_i32 : i32
    %c1_i32 = arith.constant 1 : i32
    %2 = arith.select %1, %c1_i32, %c8_i32 : i32
    %3 = vector.broadcast %2 : i32 to vector<16x128xi32>
    %4 = arith.remsi %0, %3 : vector<16x128xi32>
    %c0_i32_0 = arith.constant 0 : i32
    %5 = vector.broadcast %c0_i32_0 : i32 to vector<16x128xi32>
    %6 = arith.cmpi ne, %4, %5 : vector<16x128xi32>
    %c0_i32_1 = arith.constant 0 : i32
    %7 = vector.broadcast %c0_i32_1 : i32 to vector<16x128xi32>
    %8 = arith.cmpi slt, %4, %7 : vector<16x128xi32>
    %c0_i32_2 = arith.constant 0 : i32
    %9 = arith.cmpi slt, %2, %c0_i32_2 : i32
    %10 = vector.broadcast %9 : i1 to vector<16x128xi1>
    %11 = vector.broadcast %10 : vector<16x128xi1> to vector<16x128xi1>
    %12 = arith.xori %8, %11 : vector<16x128xi1>
    %13 = arith.andi %12, %6 : vector<16x128xi1>
    %14 = vector.broadcast %2 : i32 to vector<16x128xi32>
    %15 = arith.addi %4, %14 : vector<16x128xi32>
    %16 = arith.select %13, %15, %4 : vector<16x128xi1>, vector<16x128xi32>
    %c-1_i32 = arith.constant -1 : i32
    %17 = vector.broadcast %c-1_i32 : i32 to vector<16x128xi32>
    %18 = arith.addi %16, %17 : vector<16x128xi32>
    %c0_i32_3 = arith.constant 0 : i32
    %19 = vector.broadcast %c0_i32_3 : i32 to vector<16x128xi32>
    %20 = arith.cmpi sge, %18, %19 : vector<16x128xi32>
    %c-1_i32_4 = arith.constant -1 : i32
    %21 = vector.broadcast %c-1_i32_4 : i32 to vector<16x128xi32>
    %22 = arith.addi %16, %21 : vector<16x128xi32>
    %c7_i32 = arith.constant 7 : i32
    %23 = vector.broadcast %c7_i32 : i32 to vector<16x128xi32>
    %24 = arith.cmpi sle, %22, %23 : vector<16x128xi32>
    %25 = arith.andi %20, %24 : vector<16x128xi1>
    %c1_i32_5 = arith.constant 1 : i32
    %26 = vector.broadcast %c1_i32_5 : i32 to vector<16x128xi32>
    %27 = arith.addi %16, %26 : vector<16x128xi32>
    %c0_i32_6 = arith.constant 0 : i32
    %28 = vector.broadcast %c0_i32_6 : i32 to vector<16x128xi32>
    %29 = arith.cmpi sge, %27, %28 : vector<16x128xi32>
    %c1_i32_7 = arith.constant 1 : i32
    %30 = vector.broadcast %c1_i32_7 : i32 to vector<16x128xi32>
    %31 = arith.addi %16, %30 : vector<16x128xi32>
    %c7_i32_8 = arith.constant 7 : i32
    %32 = vector.broadcast %c7_i32_8 : i32 to vector<16x128xi32>
    %33 = arith.cmpi sle, %31, %32 : vector<16x128xi32>
    %34 = arith.andi %29, %33 : vector<16x128xi1>
    %c0 = arith.constant 0 : index
    %c0_9 = arith.constant 0 : index
    %35 = vector.load %arg0[%c0, %c0_9] : memref<16x128xbf16, #tpu.memory_space<vmem>>, vector<16x128xbf16>
    %36 = arith.extf %35 : vector<16x128xbf16> to vector<16x128xf32>
    %c1_i32_10 = arith.constant 1 : i32
    %37 = tpu.dynamic_rotate %36 by %c1_i32_10 dim 0 : vector<16x128xf32>, i32 -> vector<16x128xf32>
    %cst = arith.constant 0.000000e+00 : f32
    %38 = vector.broadcast %cst : f32 to vector<16x128xf32>
    %39 = arith.select %25, %37, %38 : vector<16x128xi1>, vector<16x128xf32>
    %c32_i32 = arith.constant 32 : i32
    %40 = tpu.dynamic_rotate %36 by %c32_i32 dim 1 : vector<16x128xf32>, i32 -> vector<16x128xf32>
    %41 = arith.addf %39, %40 : vector<16x128xf32>
    %c15_i32 = arith.constant 15 : i32
    %42 = tpu.dynamic_rotate %36 by %c15_i32 dim 0 : vector<16x128xf32>, i32 -> vector<16x128xf32>
    %cst_11 = arith.constant 0.000000e+00 : f32
    %43 = vector.broadcast %cst_11 : f32 to vector<16x128xf32>
    %44 = arith.select %34, %42, %43 : vector<16x128xi1>, vector<16x128xf32>
    %c64_i32 = arith.constant 64 : i32
    %45 = tpu.dynamic_rotate %44 by %c64_i32 dim 1 : vector<16x128xf32>, i32 -> vector<16x128xf32>
    %46 = arith.addf %41, %45 : vector<16x128xf32>
    %47 = arith.truncf %46 : vector<16x128xf32> to vector<16x128xbf16>
    %c0_12 = arith.constant 0 : index
    %c0_13 = arith.constant 0 : index
    %c0_14 = arith.constant 0 : index
    %48 = vector.load %arg2[%c0_12, %c0_13, %c0_14] : memref<3x128x256xbf16, #tpu.memory_space<vmem>>, vector<1x128x256xbf16>
    %49 = vector.shape_cast %48 : vector<1x128x256xbf16> to vector<128x256xbf16>
    %cst_15 = arith.constant dense<0.000000e+00> : vector<16x256xf32>
    %50 = tpu.matmul %47, %49, %cst_15 {dimension_numbers = #tpu.dot_dimension_numbers<[1], [0], [0], [1], [0, 0, 1, 1], [], []>} : vector<16x128xbf16>, vector<128x256xbf16>, vector<16x256xf32> -> vector<16x256xf32>
    %c0_16 = arith.constant 0 : index
    %c0_17 = arith.constant 0 : index
    %51 = vector.load %arg3[%c0_16, %c0_17] : memref<6x256xf32, #tpu.memory_space<vmem>>, vector<1x256xf32>
    %52 = vector.broadcast %51 : vector<1x256xf32> to vector<16x256xf32>
    %53 = arith.mulf %50, %52 : vector<16x256xf32>
    %c1 = arith.constant 1 : index
    %c0_18 = arith.constant 0 : index
    %54 = vector.load %arg3[%c1, %c0_18] : memref<6x256xf32, #tpu.memory_space<vmem>>, vector<1x256xf32>
    %55 = vector.broadcast %54 : vector<1x256xf32> to vector<16x256xf32>
    %56 = arith.addf %53, %55 : vector<16x256xf32>
    %57 = vector.extract_strided_slice %56 {offsets = [0, 0], sizes = [16, 128], strides = [1, 1]} : vector<16x256xf32> to vector<16x128xf32>
    %58 = vector.extract_strided_slice %56 {offsets = [0, 128], sizes = [16, 128], strides = [1, 1]} : vector<16x256xf32> to vector<16x128xf32>
    %59 = arith.negf %58 : vector<16x128xf32>
    %60 = math.exp %59 : vector<16x128xf32>
    %cst_19 = arith.constant 1.000000e+00 : f32
    %61 = vector.broadcast %cst_19 : f32 to vector<16x128xf32>
    %62 = arith.addf %61, %60 : vector<16x128xf32>
    %63 = arith.divf %61, %62 : vector<16x128xf32>
    %64 = arith.mulf %57, %63 : vector<16x128xf32>
    %c1_i32_20 = arith.constant 1 : i32
    %65 = tpu.dynamic_rotate %64 by %c1_i32_20 dim 0 : vector<16x128xf32>, i32 -> vector<16x128xf32>
    %cst_21 = arith.constant 0.000000e+00 : f32
    %66 = vector.broadcast %cst_21 : f32 to vector<16x128xf32>
    %67 = arith.select %25, %65, %66 : vector<16x128xi1>, vector<16x128xf32>
    %c32_i32_22 = arith.constant 32 : i32
    %68 = tpu.dynamic_rotate %64 by %c32_i32_22 dim 1 : vector<16x128xf32>, i32 -> vector<16x128xf32>
    %69 = arith.addf %67, %68 : vector<16x128xf32>
    %c15_i32_23 = arith.constant 15 : i32
    %70 = tpu.dynamic_rotate %64 by %c15_i32_23 dim 0 : vector<16x128xf32>, i32 -> vector<16x128xf32>
    %cst_24 = arith.constant 0.000000e+00 : f32
    %71 = vector.broadcast %cst_24 : f32 to vector<16x128xf32>
    %72 = arith.select %34, %70, %71 : vector<16x128xi1>, vector<16x128xf32>
    %c64_i32_25 = arith.constant 64 : i32
    %73 = tpu.dynamic_rotate %72 by %c64_i32_25 dim 1 : vector<16x128xf32>, i32 -> vector<16x128xf32>
    %74 = arith.addf %69, %73 : vector<16x128xf32>
    %75 = arith.truncf %74 : vector<16x128xf32> to vector<16x128xbf16>
    %c1_26 = arith.constant 1 : index
    %c0_27 = arith.constant 0 : index
    %c0_28 = arith.constant 0 : index
    %76 = vector.load %arg2[%c1_26, %c0_27, %c0_28] : memref<3x128x256xbf16, #tpu.memory_space<vmem>>, vector<1x128x256xbf16>
    %77 = vector.shape_cast %76 : vector<1x128x256xbf16> to vector<128x256xbf16>
    %cst_29 = arith.constant dense<0.000000e+00> : vector<16x256xf32>
    %78 = tpu.matmul %75, %77, %cst_29 {dimension_numbers = #tpu.dot_dimension_numbers<[1], [0], [0], [1], [0, 0, 1, 1], [], []>} : vector<16x128xbf16>, vector<128x256xbf16>, vector<16x256xf32> -> vector<16x256xf32>
    %c2 = arith.constant 2 : index
    %c0_30 = arith.constant 0 : index
    %79 = vector.load %arg3[%c2, %c0_30] : memref<6x256xf32, #tpu.memory_space<vmem>>, vector<1x256xf32>
    %80 = vector.broadcast %79 : vector<1x256xf32> to vector<16x256xf32>
    %81 = arith.mulf %78, %80 : vector<16x256xf32>
    %c3 = arith.constant 3 : index
    %c0_31 = arith.constant 0 : index
    %82 = vector.load %arg3[%c3, %c0_31] : memref<6x256xf32, #tpu.memory_space<vmem>>, vector<1x256xf32>
    %83 = vector.broadcast %82 : vector<1x256xf32> to vector<16x256xf32>
    %84 = arith.addf %81, %83 : vector<16x256xf32>
    %cst_32 = arith.constant 0.000000e+00 : f32
    %85 = vector.broadcast %cst_32 : f32 to vector<16x256xf32>
    %86 = arith.cmpf oge, %84, %85 : vector<16x256xf32>
    %cst_33 = arith.constant 2.000000e-01 : f32
    %87 = vector.broadcast %cst_33 : f32 to vector<16x256xf32>
    %88 = arith.mulf %87, %84 : vector<16x256xf32>
    %89 = arith.select %86, %84, %88 : vector<16x256xi1>, vector<16x256xf32>
    %90 = vector.extract_strided_slice %89 {offsets = [0, 0], sizes = [16, 128], strides = [1, 1]} : vector<16x256xf32> to vector<16x128xf32>
    %91 = vector.extract_strided_slice %89 {offsets = [0, 128], sizes = [16, 128], strides = [1, 1]} : vector<16x256xf32> to vector<16x128xf32>
    %92 = arith.negf %91 : vector<16x128xf32>
    %93 = math.exp %92 : vector<16x128xf32>
    %cst_34 = arith.constant 1.000000e+00 : f32
    %94 = vector.broadcast %cst_34 : f32 to vector<16x128xf32>
    %95 = arith.addf %94, %93 : vector<16x128xf32>
    %96 = arith.divf %94, %95 : vector<16x128xf32>
    %97 = arith.mulf %90, %96 : vector<16x128xf32>
    %98 = arith.addf %97, %64 : vector<16x128xf32>
    %c1_i32_35 = arith.constant 1 : i32
    %99 = tpu.dynamic_rotate %98 by %c1_i32_35 dim 0 : vector<16x128xf32>, i32 -> vector<16x128xf32>
    %cst_36 = arith.constant 0.000000e+00 : f32
    %100 = vector.broadcast %cst_36 : f32 to vector<16x128xf32>
    %101 = arith.select %25, %99, %100 : vector<16x128xi1>, vector<16x128xf32>
    %c32_i32_37 = arith.constant 32 : i32
    %102 = tpu.dynamic_rotate %98 by %c32_i32_37 dim 1 : vector<16x128xf32>, i32 -> vector<16x128xf32>
    %103 = arith.addf %101, %102 : vector<16x128xf32>
    %c15_i32_38 = arith.constant 15 : i32
    %104 = tpu.dynamic_rotate %98 by %c15_i32_38 dim 0 : vector<16x128xf32>, i32 -> vector<16x128xf32>
    %cst_39 = arith.constant 0.000000e+00 : f32
    %105 = vector.broadcast %cst_39 : f32 to vector<16x128xf32>
    %106 = arith.select %34, %104, %105 : vector<16x128xi1>, vector<16x128xf32>
    %c64_i32_40 = arith.constant 64 : i32
    %107 = tpu.dynamic_rotate %106 by %c64_i32_40 dim 1 : vector<16x128xf32>, i32 -> vector<16x128xf32>
    %108 = arith.addf %103, %107 : vector<16x128xf32>
    %109 = arith.truncf %108 : vector<16x128xf32> to vector<16x128xbf16>
    %c2_41 = arith.constant 2 : index
    %c0_42 = arith.constant 0 : index
    %c0_43 = arith.constant 0 : index
    %110 = vector.load %arg2[%c2_41, %c0_42, %c0_43] : memref<3x128x256xbf16, #tpu.memory_space<vmem>>, vector<1x128x256xbf16>
    %111 = vector.shape_cast %110 : vector<1x128x256xbf16> to vector<128x256xbf16>
    %cst_44 = arith.constant dense<0.000000e+00> : vector<16x256xf32>
    %112 = tpu.matmul %109, %111, %cst_44 {dimension_numbers = #tpu.dot_dimension_numbers<[1], [0], [0], [1], [0, 0, 1, 1], [], []>} : vector<16x128xbf16>, vector<128x256xbf16>, vector<16x256xf32> -> vector<16x256xf32>
    %c4 = arith.constant 4 : index
    %c0_45 = arith.constant 0 : index
    %113 = vector.load %arg3[%c4, %c0_45] : memref<6x256xf32, #tpu.memory_space<vmem>>, vector<1x256xf32>
    %114 = vector.broadcast %113 : vector<1x256xf32> to vector<16x256xf32>
    %115 = arith.mulf %112, %114 : vector<16x256xf32>
    %c5 = arith.constant 5 : index
    %c0_46 = arith.constant 0 : index
    %116 = vector.load %arg3[%c5, %c0_46] : memref<6x256xf32, #tpu.memory_space<vmem>>, vector<1x256xf32>
    %117 = vector.broadcast %116 : vector<1x256xf32> to vector<16x256xf32>
    %118 = arith.addf %115, %117 : vector<16x256xf32>
    %cst_47 = arith.constant 0.000000e+00 : f32
    %119 = vector.broadcast %cst_47 : f32 to vector<16x256xf32>
    %120 = arith.cmpf oge, %118, %119 : vector<16x256xf32>
    %cst_48 = arith.constant 2.000000e-01 : f32
    %121 = vector.broadcast %cst_48 : f32 to vector<16x256xf32>
    %122 = arith.mulf %121, %118 : vector<16x256xf32>
    %123 = arith.select %120, %118, %122 : vector<16x256xi1>, vector<16x256xf32>
    %124 = vector.extract_strided_slice %123 {offsets = [0, 0], sizes = [16, 128], strides = [1, 1]} : vector<16x256xf32> to vector<16x128xf32>
    %125 = vector.extract_strided_slice %123 {offsets = [0, 128], sizes = [16, 128], strides = [1, 1]} : vector<16x256xf32> to vector<16x128xf32>
    %126 = arith.negf %125 : vector<16x128xf32>
    %127 = math.exp %126 : vector<16x128xf32>
    %cst_49 = arith.constant 1.000000e+00 : f32
    %128 = vector.broadcast %cst_49 : f32 to vector<16x128xf32>
    %129 = arith.addf %128, %127 : vector<16x128xf32>
    %130 = arith.divf %128, %129 : vector<16x128xf32>
    %131 = arith.mulf %124, %130 : vector<16x128xf32>
    %132 = arith.addf %131, %98 : vector<16x128xf32>
    %133 = vector.shape_cast %132 : vector<16x128xf32> to vector<2x8x128xf32>
    %cst_50 = arith.constant dense<0.000000e+00> : vector<2x128xf32>
    %134 = vector.multi_reduction <add>, %133, %cst_50 [1] : vector<2x8x128xf32> to vector<2x128xf32>
    %135 = arith.truncf %134 : vector<2x128xf32> to vector<2x128xbf16>
    %c0_51 = arith.constant 0 : index
    %c0_52 = arith.constant 0 : index
    %c0_53 = arith.constant 0 : index
    %136 = vector.load %arg4[%c0_51, %c0_52, %c0_53] : memref<8x128x128xbf16, #tpu.memory_space<vmem>>, vector<1x128x128xbf16>
    %137 = vector.shape_cast %136 : vector<1x128x128xbf16> to vector<128x128xbf16>
    %cst_54 = arith.constant dense<0.000000e+00> : vector<2x128xf32>
    %138 = tpu.matmul %135, %137, %cst_54 {dimension_numbers = #tpu.dot_dimension_numbers<[1], [0], [0], [1], [0, 0, 1, 1], [], []>} : vector<2x128xbf16>, vector<128x128xbf16>, vector<2x128xf32> -> vector<2x128xf32>
    %c0_55 = arith.constant 0 : index
    %c0_56 = arith.constant 0 : index
    %139 = vector.load %arg5[%c0_55, %c0_56] : memref<12x128xf32, #tpu.memory_space<vmem>>, vector<1x128xf32>
    %140 = vector.broadcast %139 : vector<1x128xf32> to vector<2x128xf32>
    %141 = arith.addf %138, %140 : vector<2x128xf32>
    %c0_57 = arith.constant 0 : index
    %c0_58 = arith.constant 0 : index
    %142 = vector.load %arg1[%c0_57, %c0_58] : memref<2x128xf32, #tpu.memory_space<vmem>>, vector<2x128xf32>
    %143 = arith.truncf %142 : vector<2x128xf32> to vector<2x128xbf16>
    %c1_59 = arith.constant 1 : index
    %c0_60 = arith.constant 0 : index
    %c0_61 = arith.constant 0 : index
    %144 = vector.load %arg4[%c1_59, %c0_60, %c0_61] : memref<8x128x128xbf16, #tpu.memory_space<vmem>>, vector<1x128x128xbf16>
    %145 = vector.shape_cast %144 : vector<1x128x128xbf16> to vector<128x128xbf16>
    %cst_62 = arith.constant dense<0.000000e+00> : vector<2x128xf32>
    %146 = tpu.matmul %143, %145, %cst_62 {dimension_numbers = #tpu.dot_dimension_numbers<[1], [0], [0], [1], [0, 0, 1, 1], [], []>} : vector<2x128xbf16>, vector<128x128xbf16>, vector<2x128xf32> -> vector<2x128xf32>
    %c1_63 = arith.constant 1 : index
    %c0_64 = arith.constant 0 : index
    %147 = vector.load %arg5[%c1_63, %c0_64] : memref<12x128xf32, #tpu.memory_space<vmem>>, vector<1x128xf32>
    %148 = vector.broadcast %147 : vector<1x128xf32> to vector<2x128xf32>
    %149 = arith.mulf %146, %148 : vector<2x128xf32>
    %c5_65 = arith.constant 5 : index
    %c0_66 = arith.constant 0 : index
    %150 = vector.load %arg5[%c5_65, %c0_66] : memref<12x128xf32, #tpu.memory_space<vmem>>, vector<1x128xf32>
    %151 = vector.broadcast %150 : vector<1x128xf32> to vector<2x128xf32>
    %152 = arith.addf %149, %151 : vector<2x128xf32>
    %cst_67 = arith.constant 0.000000e+00 : f32
    %153 = vector.broadcast %cst_67 : f32 to vector<2x128xf32>
    %154 = arith.cmpf oge, %152, %153 : vector<2x128xf32>
    %cst_68 = arith.constant 2.000000e-01 : f32
    %155 = vector.broadcast %cst_68 : f32 to vector<2x128xf32>
    %156 = arith.mulf %155, %152 : vector<2x128xf32>
    %157 = arith.select %154, %152, %156 : vector<2x128xi1>, vector<2x128xf32>
    %158 = arith.truncf %157 : vector<2x128xf32> to vector<2x128xbf16>
    %c2_69 = arith.constant 2 : index
    %c0_70 = arith.constant 0 : index
    %c0_71 = arith.constant 0 : index
    %159 = vector.load %arg4[%c2_69, %c0_70, %c0_71] : memref<8x128x128xbf16, #tpu.memory_space<vmem>>, vector<1x128x128xbf16>
    %160 = vector.shape_cast %159 : vector<1x128x128xbf16> to vector<128x128xbf16>
    %cst_72 = arith.constant dense<0.000000e+00> : vector<2x128xf32>
    %161 = tpu.matmul %158, %160, %cst_72 {dimension_numbers = #tpu.dot_dimension_numbers<[1], [0], [0], [1], [0, 0, 1, 1], [], []>} : vector<2x128xbf16>, vector<128x128xbf16>, vector<2x128xf32> -> vector<2x128xf32>
    %c2_73 = arith.constant 2 : index
    %c0_74 = arith.constant 0 : index
    %162 = vector.load %arg5[%c2_73, %c0_74] : memref<12x128xf32, #tpu.memory_space<vmem>>, vector<1x128xf32>
    %163 = vector.broadcast %162 : vector<1x128xf32> to vector<2x128xf32>
    %164 = arith.mulf %161, %163 : vector<2x128xf32>
    %c6 = arith.constant 6 : index
    %c0_75 = arith.constant 0 : index
    %165 = vector.load %arg5[%c6, %c0_75] : memref<12x128xf32, #tpu.memory_space<vmem>>, vector<1x128xf32>
    %166 = vector.broadcast %165 : vector<1x128xf32> to vector<2x128xf32>
    %167 = arith.addf %164, %166 : vector<2x128xf32>
    %cst_76 = arith.constant 0.000000e+00 : f32
    %168 = vector.broadcast %cst_76 : f32 to vector<2x128xf32>
    %169 = arith.cmpf oge, %167, %168 : vector<2x128xf32>
    %cst_77 = arith.constant 2.000000e-01 : f32
    %170 = vector.broadcast %cst_77 : f32 to vector<2x128xf32>
    %171 = arith.mulf %170, %167 : vector<2x128xf32>
    %172 = arith.select %169, %167, %171 : vector<2x128xi1>, vector<2x128xf32>
    %173 = arith.truncf %172 : vector<2x128xf32> to vector<2x128xbf16>
    %c3_78 = arith.constant 3 : index
    %c0_79 = arith.constant 0 : index
    %c0_80 = arith.constant 0 : index
    %174 = vector.load %arg4[%c3_78, %c0_79, %c0_80] : memref<8x128x128xbf16, #tpu.memory_space<vmem>>, vector<1x128x128xbf16>
    %175 = vector.shape_cast %174 : vector<1x128x128xbf16> to vector<128x128xbf16>
    %cst_81 = arith.constant dense<0.000000e+00> : vector<2x128xf32>
    %176 = tpu.matmul %173, %175, %cst_81 {dimension_numbers = #tpu.dot_dimension_numbers<[1], [0], [0], [1], [0, 0, 1, 1], [], []>} : vector<2x128xbf16>, vector<128x128xbf16>, vector<2x128xf32> -> vector<2x128xf32>
    %c3_82 = arith.constant 3 : index
    %c0_83 = arith.constant 0 : index
    %177 = vector.load %arg5[%c3_82, %c0_83] : memref<12x128xf32, #tpu.memory_space<vmem>>, vector<1x128xf32>
    %178 = vector.broadcast %177 : vector<1x128xf32> to vector<2x128xf32>
    %179 = arith.mulf %176, %178 : vector<2x128xf32>
    %c7 = arith.constant 7 : index
    %c0_84 = arith.constant 0 : index
    %180 = vector.load %arg5[%c7, %c0_84] : memref<12x128xf32, #tpu.memory_space<vmem>>, vector<1x128xf32>
    %181 = vector.broadcast %180 : vector<1x128xf32> to vector<2x128xf32>
    %182 = arith.addf %179, %181 : vector<2x128xf32>
    %cst_85 = arith.constant 0.000000e+00 : f32
    %183 = vector.broadcast %cst_85 : f32 to vector<2x128xf32>
    %184 = arith.cmpf oge, %182, %183 : vector<2x128xf32>
    %cst_86 = arith.constant 2.000000e-01 : f32
    %185 = vector.broadcast %cst_86 : f32 to vector<2x128xf32>
    %186 = arith.mulf %185, %182 : vector<2x128xf32>
    %187 = arith.select %184, %182, %186 : vector<2x128xi1>, vector<2x128xf32>
    %188 = arith.truncf %187 : vector<2x128xf32> to vector<2x128xbf16>
    %c4_87 = arith.constant 4 : index
    %c0_88 = arith.constant 0 : index
    %c0_89 = arith.constant 0 : index
    %189 = vector.load %arg4[%c4_87, %c0_88, %c0_89] : memref<8x128x128xbf16, #tpu.memory_space<vmem>>, vector<1x128x128xbf16>
    %190 = vector.shape_cast %189 : vector<1x128x128xbf16> to vector<128x128xbf16>
    %cst_90 = arith.constant dense<0.000000e+00> : vector<2x128xf32>
    %191 = tpu.matmul %188, %190, %cst_90 {dimension_numbers = #tpu.dot_dimension_numbers<[1], [0], [0], [1], [0, 0, 1, 1], [], []>} : vector<2x128xbf16>, vector<128x128xbf16>, vector<2x128xf32> -> vector<2x128xf32>
    %c4_91 = arith.constant 4 : index
    %c0_92 = arith.constant 0 : index
    %192 = vector.load %arg5[%c4_91, %c0_92] : memref<12x128xf32, #tpu.memory_space<vmem>>, vector<1x128xf32>
    %193 = vector.broadcast %192 : vector<1x128xf32> to vector<2x128xf32>
    %194 = arith.mulf %191, %193 : vector<2x128xf32>
    %c8 = arith.constant 8 : index
    %c0_93 = arith.constant 0 : index
    %195 = vector.load %arg5[%c8, %c0_93] : memref<12x128xf32, #tpu.memory_space<vmem>>, vector<1x128xf32>
    %196 = vector.broadcast %195 : vector<1x128xf32> to vector<2x128xf32>
    %197 = arith.addf %194, %196 : vector<2x128xf32>
    %198 = arith.truncf %141 : vector<2x128xf32> to vector<2x128xbf16>
    %c5_94 = arith.constant 5 : index
    %c0_95 = arith.constant 0 : index
    %c0_96 = arith.constant 0 : index
    %199 = vector.load %arg4[%c5_94, %c0_95, %c0_96] : memref<8x128x128xbf16, #tpu.memory_space<vmem>>, vector<1x128x128xbf16>
    %200 = vector.shape_cast %199 : vector<1x128x128xbf16> to vector<128x128xbf16>
    %cst_97 = arith.constant dense<0.000000e+00> : vector<2x128xf32>
    %201 = tpu.matmul %198, %200, %cst_97 {dimension_numbers = #tpu.dot_dimension_numbers<[1], [0], [0], [1], [0, 0, 1, 1], [], []>} : vector<2x128xbf16>, vector<128x128xbf16>, vector<2x128xf32> -> vector<2x128xf32>
    %202 = arith.truncf %197 : vector<2x128xf32> to vector<2x128xbf16>
    %c6_98 = arith.constant 6 : index
    %c0_99 = arith.constant 0 : index
    %c0_100 = arith.constant 0 : index
    %203 = vector.load %arg4[%c6_98, %c0_99, %c0_100] : memref<8x128x128xbf16, #tpu.memory_space<vmem>>, vector<1x128x128xbf16>
    %204 = vector.shape_cast %203 : vector<1x128x128xbf16> to vector<128x128xbf16>
    %cst_101 = arith.constant dense<0.000000e+00> : vector<2x128xf32>
    %205 = tpu.matmul %202, %204, %cst_101 {dimension_numbers = #tpu.dot_dimension_numbers<[1], [0], [0], [1], [0, 0, 1, 1], [], []>} : vector<2x128xbf16>, vector<128x128xbf16>, vector<2x128xf32> -> vector<2x128xf32>
    %206 = arith.addf %201, %205 : vector<2x128xf32>
    %c9 = arith.constant 9 : index
    %c0_102 = arith.constant 0 : index
    %207 = vector.load %arg5[%c9, %c0_102] : memref<12x128xf32, #tpu.memory_space<vmem>>, vector<1x128xf32>
    %208 = vector.broadcast %207 : vector<1x128xf32> to vector<2x128xf32>
    %209 = arith.mulf %206, %208 : vector<2x128xf32>
    %c10 = arith.constant 10 : index
    %c0_103 = arith.constant 0 : index
    %210 = vector.load %arg5[%c10, %c0_103] : memref<12x128xf32, #tpu.memory_space<vmem>>, vector<1x128xf32>
    %211 = vector.broadcast %210 : vector<1x128xf32> to vector<2x128xf32>
    %212 = arith.addf %209, %211 : vector<2x128xf32>
    %cst_104 = arith.constant 0.000000e+00 : f32
    %213 = vector.broadcast %cst_104 : f32 to vector<2x128xf32>
    %214 = arith.cmpf oge, %212, %213 : vector<2x128xf32>
    %cst_105 = arith.constant 2.000000e-01 : f32
    %215 = vector.broadcast %cst_105 : f32 to vector<2x128xf32>
    %216 = arith.mulf %215, %212 : vector<2x128xf32>
    %217 = arith.select %214, %212, %216 : vector<2x128xi1>, vector<2x128xf32>
    %218 = arith.truncf %217 : vector<2x128xf32> to vector<2x128xbf16>
    %c7_106 = arith.constant 7 : index
    %c0_107 = arith.constant 0 : index
    %c0_108 = arith.constant 0 : index
    %219 = vector.load %arg4[%c7_106, %c0_107, %c0_108] : memref<8x128x128xbf16, #tpu.memory_space<vmem>>, vector<1x128x128xbf16>
    %220 = vector.shape_cast %219 : vector<1x128x128xbf16> to vector<128x128xbf16>
    %cst_109 = arith.constant dense<0.000000e+00> : vector<2x128xf32>
    %221 = tpu.matmul %218, %220, %cst_109 {dimension_numbers = #tpu.dot_dimension_numbers<[1], [0], [0], [1], [0, 0, 1, 1], [], []>} : vector<2x128xbf16>, vector<128x128xbf16>, vector<2x128xf32> -> vector<2x128xf32>
    %c11 = arith.constant 11 : index
    %c0_110 = arith.constant 0 : index
    %222 = vector.load %arg5[%c11, %c0_110] : memref<12x128xf32, #tpu.memory_space<vmem>>, vector<1x128xf32>
    %223 = vector.broadcast %222 : vector<1x128xf32> to vector<2x128xf32>
    %224 = arith.addf %221, %223 : vector<2x128xf32>
    %c0_111 = arith.constant 0 : index
    %c0_112 = arith.constant 0 : index
    %225 = vector.load %arg6[%c0_111, %c0_112] : memref<2x128xf32, #tpu.memory_space<vmem>>, vector<2x128xf32>
    tpu.vector_store %arg6[%c0_111, %c0_112], %224 {strides = array<i32>} : memref<2x128xf32, #tpu.memory_space<vmem>>, vector<2x128xf32>,
    return
  }
}

</mosaic_0001>

<llo_original>
// kernel: tpu_custom_call.1
$region0: #{tpu_custom_call.1}
  #allocation0 [shape = 'u32[]', space=smem, size = 0x4, offset = 0x4, fixed_abs, tag = 'smem constant byte address 0x4 - core index']
  #allocation1 [shape = 'u32[72,128]{1,0:T(1,128)}', space=vmem, size = 0x9000, scoped, tag = 'internal scratch']
  %s0 = inlined_call_operand.hbm [shape: bf16[16,128], index: 0, kind: input, shape index: {}]
  %s1 = inlined_call_operand.hbm [shape: f32[2,128], index: 1, kind: input, shape index: {}]
  %s2 = inlined_call_operand.hbm [shape: bf16[3,128,256], index: 2, kind: input, shape index: {}]
  %s3 = inlined_call_operand.hbm [shape: f32[6,256], index: 3, kind: input, shape index: {}]
  %s4 = inlined_call_operand.hbm [shape: bf16[8,128,128], index: 4, kind: input, shape index: {}]
  %s5 = inlined_call_operand.hbm [shape: f32[12,128], index: 5, kind: input, shape index: {}]
  %s6 = inlined_call_operand.hbm [shape: f32[2,128], index: 6, kind: output, shape index: {}]
  %s7 = sld [smem:[#allocation0]]
  $region58: #{tpu_custom_call.1} parent=0
    _
  %s9 = ssub.s32 1, %s7
  %s10 = scalar_select 0, %s9, %s7
  $region1: #{tpu_custom_call.1} parent=0
    #allocation2 [shape = 'u8[4096]{0}', space=vmem, size = 0x1000, scoped, tag = 'input window, operand 0, single buffered']
    #allocation3 [shape = 's32[1]{0}', space=sflag, size = 0x4, scoped, tag = 'scoped memory for tpu_custom_call.1']
    #allocation4 [shape = 's32[1]{0}', space=sflag, size = 0x4, scoped, tag = 'scoped memory for tpu_custom_call.1']
    #allocation5 [shape = 'u8[1024]{0}', space=vmem, size = 0x400, scoped, tag = 'input window, operand 1, single buffered']
    #allocation6 [shape = 's32[1]{0}', space=sflag, size = 0x4, scoped, tag = 'scoped memory for tpu_custom_call.1']
    #allocation7 [shape = 'u8[196608]{0}', space=vmem, size = 0x30000, scoped, tag = 'input window, operand 2, single buffered']
    #allocation8 [shape = 'u8[8192]{0}', space=vmem, size = 0x2000, scoped, tag = 'input window, operand 3, single buffered']
    #allocation9 [shape = 's32[1]{0}', space=sflag, size = 0x4, scoped, tag = 'scoped memory for tpu_custom_call.1']
    #allocation10 [shape = 'u8[262144]{0}', space=vmem, size = 0x40000, scoped, tag = 'input window, operand 4, single buffered']
    #allocation11 [shape = 'u8[8192]{0}', space=vmem, size = 0x2000, scoped, tag = 'input window, operand 5, single buffered']
    #allocation12 [shape = 's32[1]{0}', space=sflag, size = 0x4, scoped, tag = 'scoped memory for tpu_custom_call.1']
    #allocation13 [shape = 'u8[1024]{0}', space=vmem, size = 0x400, scoped, tag = 'output window, operand 0, single buffered']
    %11 = vsyncpa [#allocation3], 0
    %12 = vsyncpa [#allocation6], 0
    %13 = vsyncpa [#allocation9], 0
    %14 = vsyncpa [#allocation12], 0
    %15 = vsyncpa [#allocation4], 0
    // Predicated region
    $region2: #{tpu_custom_call.1} parent=1 // pred_check
      _
    $region3: #{tpu_custom_call.1} parent=1 // pred_check_branch
      %17 = sbr.rel (0) target = $region5
    $region4: #{tpu_custom_call.1} parent=1 // pred_region
      %19 = vsyncadd [#allocation3], 0
      %s20 = sshll.u32 %s0, 4
      %s21 = int_to_ptr.hbm [resolvable:$true] %s20
      %s22 = sshll.u32 [#allocation2], 4
      %s23 = int_to_ptr.vmem [resolvable:$true] %s22
      %28 = dma.hbm_to_vmem [thread:$0]  %s21, 128, %s23, [#allocation3], 64, 64, 4
    $region5: #{tpu_custom_call.1} parent=1 // pred_fallthru
      _
    // Predicated region
    $region6: #{tpu_custom_call.1} parent=1 // pred_check
      _
    $region7: #{tpu_custom_call.1} parent=1 // pred_check_branch
      %30 = sbr.rel (0) target = $region9
    $region8: #{tpu_custom_call.1} parent=1 // pred_region
      %32 = vsyncadd [#allocation6], 0
      %s34 = sshll.u32 %s1, 4
      %s35 = int_to_ptr.hbm [resolvable:$true] %s34
      %s36 = sshll.u32 [#allocation5], 4
      %s37 = int_to_ptr.vmem [resolvable:$true] %s36
      %39 = dma.hbm_to_vmem [thread:$0]  %s35, 32, %s37, [#allocation6]
    $region9: #{tpu_custom_call.1} parent=1 // pred_fallthru
      _
    // Predicated region
    $region10: #{tpu_custom_call.1} parent=1 // pred_check
      _
    $region11: #{tpu_custom_call.1} parent=1 // pred_check_branch
      %41 = sbr.rel (0) target = $region13
    $region12: #{tpu_custom_call.1} parent=1 // pred_region
      %43 = vsyncadd [#allocation6], 0
      %s44 = sshll.u32 %s2, 4
      %s45 = int_to_ptr.hbm [resolvable:$true] %s44
      %s46 = sshll.u32 [#allocation7], 4
      %s47 = int_to_ptr.vmem [resolvable:$true] %s46
      %52 = dma.hbm_to_vmem [thread:$0]  %s45, 6144, %s47, [#allocation6], 128, 128, 8
    $region13: #{tpu_custom_call.1} parent=1 // pred_fallthru
      _
    // Predicated region
    $region14: #{tpu_custom_call.1} parent=1 // pred_check
      _
    $region15: #{tpu_custom_call.1} parent=1 // pred_check_branch
      %54 = sbr.rel (0) target = $region17
    $region16: #{tpu_custom_call.1} parent=1 // pred_region
      %56 = vsyncadd [#allocation9], 0
      %s58 = sshll.u32 %s3, 4
      %s59 = int_to_ptr.hbm [resolvable:$true] %s58
      %s60 = sshll.u32 [#allocation8], 4
      %s61 = int_to_ptr.vmem [resolvable:$true] %s60
      %63 = dma.hbm_to_vmem [thread:$0]  %s59, 256, %s61, [#allocation9]
    $region17: #{tpu_custom_call.1} parent=1 // pred_fallthru
      _
    // Predicated region
    $region18: #{tpu_custom_call.1} parent=1 // pred_check
      _
    $region19: #{tpu_custom_call.1} parent=1 // pred_check_branch
      %65 = sbr.rel (0) target = $region21
    $region20: #{tpu_custom_call.1} parent=1 // pred_region
      %67 = vsyncadd [#allocation9], 0
      %s68 = sshll.u32 %s4, 4
      %s69 = int_to_ptr.hbm [resolvable:$true] %s68
      %s70 = sshll.u32 [#allocation10], 4
      %s71 = int_to_ptr.vmem [resolvable:$true] %s70
      %76 = dma.hbm_to_vmem [thread:$0]  %s69, 8192, %s71, [#allocation9], 64, 64, 4
    $region21: #{tpu_custom_call.1} parent=1 // pred_fallthru
      _
    // Predicated region
    $region22: #{tpu_custom_call.1} parent=1 // pred_check
      _
    $region23: #{tpu_custom_call.1} parent=1 // pred_check_branch
      %78 = sbr.rel (0) target = $region25
    $region24: #{tpu_custom_call.1} parent=1 // pred_region
      %80 = vsyncadd [#allocation12], 0
      %s81 = sshll.u32 %s5, 4
      %s82 = int_to_ptr.hbm [resolvable:$true] %s81
      %s83 = sshll.u32 [#allocation11], 4
      %s84 = int_to_ptr.vmem [resolvable:$true] %s83
      %89 = dma.hbm_to_vmem [thread:$0]  %s82, 256, %s84, [#allocation12], 128, 128, 8
    $region25: #{tpu_custom_call.1} parent=1 // pred_fallthru
      _
    // Predicated region
    $region26: #{tpu_custom_call.1} parent=1 // pred_check
      _
    $region27: #{tpu_custom_call.1} parent=1 // pred_check_branch
      %91 = sbr.rel (0) target = $region29
    $region28: #{tpu_custom_call.1} parent=1 // pred_region
      %93 = dma.done [#allocation3], 128
    $region29: #{tpu_custom_call.1} parent=1 // pred_fallthru
      _
    // Predicated region
    $region30: #{tpu_custom_call.1} parent=1 // pred_check
      _
    $region31: #{tpu_custom_call.1} parent=1 // pred_check_branch
      %95 = sbr.rel (0) target = $region33
    $region32: #{tpu_custom_call.1} parent=1 // pred_region
      %97 = dma.done [#allocation6], 32
    $region33: #{tpu_custom_call.1} parent=1 // pred_fallthru
      _
    // Predicated region
    $region34: #{tpu_custom_call.1} parent=1 // pred_check
      _
    $region35: #{tpu_custom_call.1} parent=1 // pred_check_branch
      %99 = sbr.rel (0) target = $region37
    $region36: #{tpu_custom_call.1} parent=1 // pred_region
      %101 = dma.done [#allocation6], 6144
    $region37: #{tpu_custom_call.1} parent=1 // pred_fallthru
      _
    // Predicated region
    $region38: #{tpu_custom_call.1} parent=1 // pred_check
      _
    $region39: #{tpu_custom_call.1} parent=1 // pred_check_branch
      %103 = sbr.rel (0) target = $region41
    $region40: #{tpu_custom_call.1} parent=1 // pred_region
      %105 = dma.done [#allocation9], 256
    $region41: #{tpu_custom_call.1} parent=1 // pred_fallthru
      _
    // Predicated region
    $region42: #{tpu_custom_call.1} parent=1 // pred_check
      _
    $region43: #{tpu_custom_call.1} parent=1 // pred_check_branch
      %107 = sbr.rel (0) target = $region45
    $region44: #{tpu_custom_call.1} parent=1 // pred_region
      %109 = dma.done [#allocation9], 8192
    $region45: #{tpu_custom_call.1} parent=1 // pred_fallthru
      _
    // Predicated region
    $region46: #{tpu_custom_call.1} parent=1 // pred_check
      _
    $region47: #{tpu_custom_call.1} parent=1 // pred_check_branch
      %111 = sbr.rel (0) target = $region49
    $region48: #{tpu_custom_call.1} parent=1 // pred_region
      %113 = dma.done [#allocation12], 256
    $region49: #{tpu_custom_call.1} parent=1 // pred_fallthru
      _
    %v114 = vlaneseq
    %v115 = vshrl.u32 %v114, 7
    %v116 = vadd.s32 %v115, 8
    %vm117 = vcmp.lt.s32.totalorder %v115, 0
    %v118 = vsub.s32 0, %v115
    %v119 = vsel %vm117, %v118, %v115
    %v120 = vshrl.u32 %v119, 3
    %v121 = vand.u32 %v119, 7
    %v122 = vsub.s32 0, %v121
    %v123 = vsel %vm117, %v122, %v121
    %vm124 = vcmp.lt.s32.totalorder %v116, 0
    %v125 = vsub.s32 0, %v116
    %v126 = vsel %vm124, %v125, %v116
    %v127 = vshrl.u32 %v126, 3
    %v128 = vand.u32 %v126, 7
    %v129 = vsub.s32 0, %v128
    %v130 = vsel %vm124, %v129, %v128
    %vm131 = vcmp.ne.s32.totalorder %v123, 0
    %vm132 = vcmp.ne.s32.totalorder %v130, 0
    %vm133 = vcmp.lt.s32.totalorder %v123, 0
    %vm134 = vcmp.lt.s32.totalorder %v130, 0
    %vm135 = vmand %vm133, %vm131
    %vm136 = vmand %vm134, %vm132
    %v137 = vadd.s32 %v123, 8
    %v138 = vadd.s32 %v130, 8
    %v139 = vsel %vm135, %v137, %v123
    %v140 = vsel %vm136, %v138, %v130
    %v141 = vadd.s32 %v139, 4294967295
    %v142 = vadd.s32 %v140, 4294967295
    %vm143 = vcmp.ge.s32.totalorder %v141, 0
    %vm144 = vcmp.ge.s32.totalorder %v142, 0
    %vm145 = vcmp.le.s32.totalorder %v141, 7
    %vm146 = vcmp.le.s32.totalorder %v142, 7
    %vm147 = vmand %vm143, %vm145
    %vm148 = vmand %vm144, %vm146
    %v149 = vadd.s32 %v139, 1
    %v150 = vadd.s32 %v140, 1
    %vm151 = vcmp.ge.s32.totalorder %v149, 0
    %vm152 = vcmp.ge.s32.totalorder %v150, 0
    %vm153 = vcmp.le.s32.totalorder %v149, 7
    %vm154 = vcmp.le.s32.totalorder %v150, 7
    %vm155 = vmand %vm151, %vm153
    %vm156 = vmand %vm152, %vm154
    %v157 = vld [vmem:[#allocation2] sm:$0xf]
    %v158 = vld [vmem:[#allocation2 + $0x4] sm:$0xf]
    %v159 = vunpack.c.l.bf16 %v157
    %v160 = vunpack.c.l.bf16 %v158
    %v161 = vrot.slane %v159, 7
    %v162 = vrot.slane %v160, 7
    %vm163 = vcmp.lt.s32.totalorder %v115, 1
    %v164 = vsel %vm163, %v161, %v162
    %v165 = vsel %vm163, %v162, %v161
    %v166 = vsel %vm147, %v165, 0.0
    %v167 = vsel %vm148, %v164, 0.0
    %168 = vrot.lane.b32.xlu0 %v159, 32
    %v169 = vpop.permute.xlu0 %168
    %170 = vrot.lane.b32.xlu0 %v160, 32
    %v171 = vpop.permute.xlu0 %170
    %v172 = vadd.f32 %v166, %v169
    %v173 = vadd.f32 %v167, %v171
    %v174 = vrot.slane %v159, 1
    %v175 = vrot.slane %v160, 1
    %vm176 = vcmp.lt.s32.totalorder %v115, 7
    %v177 = vsel %vm176, %v174, %v175
    %v178 = vsel %vm176, %v175, %v174
    %v179 = vsel %vm155, %v177, 0.0
    %v180 = vsel %vm156, %v178, 0.0
    %181 = vrot.lane.b32.xlu0 %v179, 64
    %v182 = vpop.permute.xlu0 %181
    %183 = vrot.lane.b32.xlu0 %v180, 64
    %v184 = vpop.permute.xlu0 %183
    %v185 = vadd.f32 %v172, %v182
    %v186 = vadd.f32 %v173, %v184
    %v187 = vpack.c.bf16 %v186, %v185
    %v188 = vld [vmem:[#allocation7] sm:$0xff]
    %v189 = vld [vmem:[#allocation7 + $0x8] sm:$0xff]
    %v190 = vld [vmem:[#allocation7 + $0x10] sm:$0xff]
    %v191 = vld [vmem:[#allocation7 + $0x18] sm:$0xff]
    %v192 = vld [vmem:[#allocation7 + $0x20] sm:$0xff]
    %v193 = vld [vmem:[#allocation7 + $0x28] sm:$0xff]
    %v194 = vld [vmem:[#allocation7 + $0x30] sm:$0xff]
    %v195 = vld [vmem:[#allocation7 + $0x38] sm:$0xff]
    %v196 = vld [vmem:[#allocation7 + $0x40] sm:$0xff]
    %v197 = vld [vmem:[#allocation7 + $0x48] sm:$0xff]
    %v198 = vld [vmem:[#allocation7 + $0x50] sm:$0xff]
    %v199 = vld [vmem:[#allocation7 + $0x58] sm:$0xff]
    %v200 = vld [vmem:[#allocation7 + $0x60] sm:$0xff]
    %v201 = vld [vmem:[#allocation7 + $0x68] sm:$0xff]
    %v202 = vld [vmem:[#allocation7 + $0x70] sm:$0xff]
    %v203 = vld [vmem:[#allocation7 + $0x78] sm:$0xff]
    %v220 = vunpack.c.l.b16 %v188
    %v221 = vunpack.c.h.b16 %v188
    %v222 = vunpack.c.l.b16 %v189
    %v223 = vunpack.c.h.b16 %v189
    %v224 = vunpack.c.l.b16 %v190
    %v225 = vunpack.c.h.b16 %v190
    %v226 = vunpack.c.l.b16 %v191
    %v227 = vunpack.c.h.b16 %v191
    %v228 = vunpack.c.l.b16 %v192
    %v229 = vunpack.c.h.b16 %v192
    %v230 = vunpack.c.l.b16 %v193
    %v231 = vunpack.c.h.b16 %v193
    %v232 = vunpack.c.l.b16 %v194
    %v233 = vunpack.c.h.b16 %v194
    %v234 = vunpack.c.l.b16 %v195
    %v235 = vunpack.c.h.b16 %v195
    %v236 = vunpack.c.l.b16 %v196
    %v237 = vunpack.c.h.b16 %v196
    %v238 = vunpack.c.l.b16 %v197
    %v239 = vunpack.c.h.b16 %v197
    %v240 = vunpack.c.l.b16 %v198
    %v241 = vunpack.c.h.b16 %v198
    %v242 = vunpack.c.l.b16 %v199
    %v243 = vunpack.c.h.b16 %v199
    %v244 = vunpack.c.l.b16 %v200
    %v245 = vunpack.c.h.b16 %v200
    %v246 = vunpack.c.l.b16 %v201
    %v247 = vunpack.c.h.b16 %v201
    %v248 = vunpack.c.l.b16 %v202
    %v249 = vunpack.c.h.b16 %v202
    %v250 = vunpack.c.l.b16 %v203
    %v251 = vunpack.c.h.b16 %v203
    %v252 = vpack.c.b16 %v222, %v220
    %v253 = vpack.c.b16 %v223, %v221
    %v254 = vpack.c.b16 %v226, %v224
    %v255 = vpack.c.b16 %v227, %v225
    %v256 = vpack.c.b16 %v230, %v228
    %v257 = vpack.c.b16 %v231, %v229
    %v258 = vpack.c.b16 %v234, %v232
    %v259 = vpack.c.b16 %v235, %v233
    %v260 = vpack.c.b16 %v238, %v236
    %v261 = vpack.c.b16 %v239, %v237
    %v262 = vpack.c.b16 %v242, %v240
    %v263 = vpack.c.b16 %v243, %v241
    %v264 = vpack.c.b16 %v246, %v244
    %v265 = vpack.c.b16 %v247, %v245
    %v266 = vpack.c.b16 %v250, %v248
    %v267 = vpack.c.b16 %v251, %v249
    %284 = vmatpush.bf16.msra.mxu0 %v266
    %285 = vmatpush.bf16.msra.mxu0 %v264
    %286 = vmatpush.bf16.msra.mxu0 %v262
    %287 = vmatpush.bf16.msra.mxu0 %v260
    %288 = vmatpush.bf16.msra.mxu0 %v258
    %289 = vmatpush.bf16.msra.mxu0 %v256
    %290 = vmatpush.bf16.msra.mxu0 %v254
    %291 = vmatpush.bf16.msra.mxu0 %v252
    %292 = vmatmul.bf16.gmra.mxu0 %v187
    %v293 = vpop.f32.mrf.mxu0
    %v294 = vadd.f32 0.0, %v293
    %v295 = vpop.f32.mrf.mxu0
    %v296 = vadd.f32 0.0, %v295
    %297 = vdwg.mxu0
    %298 = vmatpush.bf16.msra.mxu0 %v267
    %299 = vmatpush.bf16.msra.mxu0 %v265
    %300 = vmatpush.bf16.msra.mxu0 %v263
    %301 = vmatpush.bf16.msra.mxu0 %v261
    %302 = vmatpush.bf16.msra.mxu0 %v259
    %303 = vmatpush.bf16.msra.mxu0 %v257
    %304 = vmatpush.bf16.msra.mxu0 %v255
    %305 = vmatpush.bf16.msra.mxu0 %v253
    %306 = vmatmul.bf16.gmra.mxu0 %v187
    %v307 = vpop.f32.mrf.mxu0
    %v308 = vadd.f32 0.0, %v307
    %v309 = vpop.f32.mrf.mxu0
    %v310 = vadd.f32 0.0, %v309
    %311 = vdwg.mxu0
    %v312 = vld [vmem:[#allocation8] ss:$8 sm:$0x3]
    %v314 = vperm.slane %v312, 0
    %v315 = vperm.slane %v312, 1
    %v318 = vmul.f32 %v294, %v314
    %v319 = vmul.f32 %v308, %v315
    %v320 = vmul.f32 %v296, %v314
    %v321 = vmul.f32 %v310, %v315
    %s322 = scalar_lea.vmem [#allocation8], 1
    %v323 = vld [vmem:[%s322] ss:$8 sm:$0x3]
    %v325 = vperm.slane %v323, 0
    %v326 = vperm.slane %v323, 1
    %v329 = vadd.f32 %v318, %v325
    %v330 = vadd.f32 %v319, %v326
    %v331 = vadd.f32 %v320, %v325
    %v332 = vadd.f32 %v321, %v326
    %v333 = vxor.u32 %v330, 2147483648
    %v334 = vxor.u32 %v332, 2147483648
    %v335 = vmul.f32 %v333, 1.442695
    %v336 = vpow.pop %v335
    %v337 = vmul.f32 %v334, 1.442695
    %v338 = vpow.pop %v337
    %v339 = vadd.f32 %v336, 1.0
    %v340 = vadd.f32 %v338, 1.0
    %v341 = vrcp.pop %v339
    %v342 = vmul.f32 %v339, %v341
    %v343 = vsub.f32 1.0, %v342
    %v344 = vmul.f32 %v341, %v343
    %v345 = vadd.f32 %v341, %v344
    %vm346 = vweird.f32 %v339
    %vm347 = vweird.f32 %v341
    %vm348 = vmor %vm346, %vm347
    %v349 = vsel %vm348, %v341, %v345
    %v350 = vand.u32 2147483647, %v339
    %vm351 = vcmp.eq.f32.partialorder %v350, 8.507059e+37
    %v352 = vand.u32 %v339, 2147483648
    %v353 = vor.u32 1.1754944e-38, %v352
    %v354 = vsel %vm351, %v353, %v349
    %v355 = vmul.f32 1.0, %v354
    %v356 = vrcp.pop %v340
    %v357 = vmul.f32 %v340, %v356
    %v358 = vsub.f32 1.0, %v357
    %v359 = vmul.f32 %v356, %v358
    %v360 = vadd.f32 %v356, %v359
    %vm361 = vweird.f32 %v340
    %vm362 = vweird.f32 %v356
    %vm363 = vmor %vm361, %vm362
    %v364 = vsel %vm363, %v356, %v360
    %v365 = vand.u32 2147483647, %v340
    %vm366 = vcmp.eq.f32.partialorder %v365, 8.507059e+37
    %v367 = vand.u32 %v340, 2147483648
    %v368 = vor.u32 1.1754944e-38, %v367
    %v369 = vsel %vm366, %v368, %v364
    %v370 = vmul.f32 1.0, %v369
    %v371 = vmul.f32 %v329, %v355
    %v372 = vmul.f32 %v331, %v370
    %v373 = vrot.slane %v371, 7
    %v374 = vrot.slane %v372, 7
    %v375 = vsel %vm163, %v373, %v374
    %v376 = vsel %vm163, %v374, %v373
    %v377 = vsel %vm147, %v376, 0.0
    %v378 = vsel %vm148, %v375, 0.0
    %379 = vrot.lane.b32.xlu0 %v371, 32
    %v380 = vpop.permute.xlu0 %379
    %381 = vrot.lane.b32.xlu0 %v372, 32
    %v382 = vpop.permute.xlu0 %381
    %v383 = vadd.f32 %v377, %v380
    %v384 = vadd.f32 %v378, %v382
    %v385 = vrot.slane %v371, 1
    %v386 = vrot.slane %v372, 1
    %v387 = vsel %vm176, %v385, %v386
    %v388 = vsel %vm176, %v386, %v385
    %v389 = vsel %vm155, %v387, 0.0
    %v390 = vsel %vm156, %v388, 0.0
    %391 = vrot.lane.b32.xlu0 %v389, 64
    %v392 = vpop.permute.xlu0 %391
    %393 = vrot.lane.b32.xlu0 %v390, 64
    %v394 = vpop.permute.xlu0 %393
    %v395 = vadd.f32 %v383, %v392
    %v396 = vadd.f32 %v384, %v394
    %v397 = vpack.c.bf16 %v396, %v395
    %s398 = scalar_lea.vmem [#allocation7], 128
    %v399 = vld [vmem:[%s398] sm:$0xff]
    %v400 = vld [vmem:[%s398 + $0x8] sm:$0xff]
    %v401 = vld [vmem:[%s398 + $0x10] sm:$0xff]
    %v402 = vld [vmem:[%s398 + $0x18] sm:$0xff]
    %v403 = vld [vmem:[%s398 + $0x20] sm:$0xff]
    %v404 = vld [vmem:[%s398 + $0x28] sm:$0xff]
    %v405 = vld [vmem:[%s398 + $0x30] sm:$0xff]
    %v406 = vld [vmem:[%s398 + $0x38] sm:$0xff]
    %v407 = vld [vmem:[%s398 + $0x40] sm:$0xff]
    %v408 = vld [vmem:[%s398 + $0x48] sm:$0xff]
    %v409 = vld [vmem:[%s398 + $0x50] sm:$0xff]
    %v410 = vld [vmem:[%s398 + $0x58] sm:$0xff]
    %v411 = vld [vmem:[%s398 + $0x60] sm:$0xff]
    %v412 = vld [vmem:[%s398 + $0x68] sm:$0xff]
    %v413 = vld [vmem:[%s398 + $0x70] sm:$0xff]
    %v414 = vld [vmem:[%s398 + $0x78] sm:$0xff]
    %v431 = vunpack.c.l.b16 %v399
    %v432 = vunpack.c.h.b16 %v399
    %v433 = vunpack.c.l.b16 %v400
    %v434 = vunpack.c.h.b16 %v400
    %v435 = vunpack.c.l.b16 %v401
    %v436 = vunpack.c.h.b16 %v401
    %v437 = vunpack.c.l.b16 %v402
    %v438 = vunpack.c.h.b16 %v402
    %v439 = vunpack.c.l.b16 %v403
    %v440 = vunpack.c.h.b16 %v403
    %v441 = vunpack.c.l.b16 %v404
    %v442 = vunpack.c.h.b16 %v404
    %v443 = vunpack.c.l.b16 %v405
    %v444 = vunpack.c.h.b16 %v405
    %v445 = vunpack.c.l.b16 %v406
    %v446 = vunpack.c.h.b16 %v406
    %v447 = vunpack.c.l.b16 %v407
    %v448 = vunpack.c.h.b16 %v407
    %v449 = vunpack.c.l.b16 %v408
    %v450 = vunpack.c.h.b16 %v408
    %v451 = vunpack.c.l.b16 %v409
    %v452 = vunpack.c.h.b16 %v409
    %v453 = vunpack.c.l.b16 %v410
    %v454 = vunpack.c.h.b16 %v410
    %v455 = vunpack.c.l.b16 %v411
    %v456 = vunpack.c.h.b16 %v411
    %v457 = vunpack.c.l.b16 %v412
    %v458 = vunpack.c.h.b16 %v412
    %v459 = vunpack.c.l.b16 %v413
    %v460 = vunpack.c.h.b16 %v413
    %v461 = vunpack.c.l.b16 %v414
    %v462 = vunpack.c.h.b16 %v414
    %v463 = vpack.c.b16 %v433, %v431
    %v464 = vpack.c.b16 %v434, %v432
    %v465 = vpack.c.b16 %v437, %v435
    %v466 = vpack.c.b16 %v438, %v436
    %v467 = vpack.c.b16 %v441, %v439
    %v468 = vpack.c.b16 %v442, %v440
    %v469 = vpack.c.b16 %v445, %v443
    %v470 = vpack.c.b16 %v446, %v444
    %v471 = vpack.c.b16 %v449, %v447
    %v472 = vpack.c.b16 %v450, %v448
    %v473 = vpack.c.b16 %v453, %v451
    %v474 = vpack.c.b16 %v454, %v452
    %v475 = vpack.c.b16 %v457, %v455
    %v476 = vpack.c.b16 %v458, %v456
    %v477 = vpack.c.b16 %v461, %v459
    %v478 = vpack.c.b16 %v462, %v460
    %495 = vmatpush.bf16.msra.mxu0 %v477
    %496 = vmatpush.bf16.msra.mxu0 %v475
    %497 = vmatpush.bf16.msra.mxu0 %v473
    %498 = vmatpush.bf16.msra.mxu0 %v471
    %499 = vmatpush.bf16.msra.mxu0 %v469
    %500 = vmatpush.bf16.msra.mxu0 %v467
    %501 = vmatpush.bf16.msra.mxu0 %v465
    %502 = vmatpush.bf16.msra.mxu0 %v463
    %503 = vmatmul.bf16.gmra.mxu0 %v397
    %v504 = vpop.f32.mrf.mxu0
    %v505 = vadd.f32 0.0, %v504
    %v506 = vpop.f32.mrf.mxu0
    %v507 = vadd.f32 0.0, %v506
    %508 = vdwg.mxu0
    %509 = vmatpush.bf16.msra.mxu0 %v478
    %510 = vmatpush.bf16.msra.mxu0 %v476
    %511 = vmatpush.bf16.msra.mxu0 %v474
    %512 = vmatpush.bf16.msra.mxu0 %v472
    %513 = vmatpush.bf16.msra.mxu0 %v470
    %514 = vmatpush.bf16.msra.mxu0 %v468
    %515 = vmatpush.bf16.msra.mxu0 %v466
    %516 = vmatpush.bf16.msra.mxu0 %v464
    %517 = vmatmul.bf16.gmra.mxu0 %v397
    %v518 = vpop.f32.mrf.mxu0
    %v519 = vadd.f32 0.0, %v518
    %v520 = vpop.f32.mrf.mxu0
    %v521 = vadd.f32 0.0, %v520
    %522 = vdwg.mxu0
    %s523 = scalar_lea.vmem [#allocation8], 2
    %v524 = vld [vmem:[%s523] ss:$8 sm:$0x3]
    %v526 = vperm.slane %v524, 0
    %v527 = vperm.slane %v524, 1
    %v530 = vmul.f32 %v505, %v526
    %v531 = vmul.f32 %v519, %v527
    %v532 = vmul.f32 %v507, %v526
    %v533 = vmul.f32 %v521, %v527
    %s534 = scalar_lea.vmem [#allocation8], 3
    %v535 = vld [vmem:[%s534] ss:$8 sm:$0x3]
    %v537 = vperm.slane %v535, 0
    %v538 = vperm.slane %v535, 1
    %v541 = vadd.f32 %v530, %v537
    %v542 = vadd.f32 %v531, %v538
    %v543 = vadd.f32 %v532, %v537
    %v544 = vadd.f32 %v533, %v538
    %vm545 = vcmp.ge.f32.partialorder %v541, 0.0
    %vm546 = vcmp.ge.f32.partialorder %v542, 0.0
    %vm547 = vcmp.ge.f32.partialorder %v543, 0.0
    %vm548 = vcmp.ge.f32.partialorder %v544, 0.0
    %v549 = vmul.f32 %v541, 0.2
    %v550 = vmul.f32 %v542, 0.2
    %v551 = vmul.f32 %v543, 0.2
    %v552 = vmul.f32 %v544, 0.2
    %v553 = vsel %vm545, %v541, %v549
    %v554 = vsel %vm546, %v542, %v550
    %v555 = vsel %vm547, %v543, %v551
    %v556 = vsel %vm548, %v544, %v552
    %v557 = vxor.u32 %v554, 2147483648
    %v558 = vxor.u32 %v556, 2147483648
    %v559 = vmul.f32 %v557, 1.442695
    %v560 = vpow.pop %v559
    %v561 = vmul.f32 %v558, 1.442695
    %v562 = vpow.pop %v561
    %v563 = vadd.f32 %v560, 1.0
    %v564 = vadd.f32 %v562, 1.0
    %v565 = vrcp.pop %v563
    %v566 = vmul.f32 %v563, %v565
    %v567 = vsub.f32 1.0, %v566
    %v568 = vmul.f32 %v565, %v567
    %v569 = vadd.f32 %v565, %v568
    %vm570 = vweird.f32 %v563
    %vm571 = vweird.f32 %v565
    %vm572 = vmor %vm570, %vm571
    %v573 = vsel %vm572, %v565, %v569
    %v574 = vand.u32 2147483647, %v563
    %vm575 = vcmp.eq.f32.partialorder %v574, 8.507059e+37
    %v576 = vand.u32 %v563, 2147483648
    %v577 = vor.u32 1.1754944e-38, %v576
    %v578 = vsel %vm575, %v577, %v573
    %v579 = vmul.f32 1.0, %v578
    %v580 = vrcp.pop %v564
    %v581 = vmul.f32 %v564, %v580
    %v582 = vsub.f32 1.0, %v581
    %v583 = vmul.f32 %v580, %v582
    %v584 = vadd.f32 %v580, %v583
    %vm585 = vweird.f32 %v564
    %vm586 = vweird.f32 %v580
    %vm587 = vmor %vm585, %vm586
    %v588 = vsel %vm587, %v580, %v584
    %v589 = vand.u32 2147483647, %v564
    %vm590 = vcmp.eq.f32.partialorder %v589, 8.507059e+37
    %v591 = vand.u32 %v564, 2147483648
    %v592 = vor.u32 1.1754944e-38, %v591
    %v593 = vsel %vm590, %v592, %v588
    %v594 = vmul.f32 1.0, %v593
    %v595 = vmul.f32 %v553, %v579
    %v596 = vmul.f32 %v555, %v594
    %v597 = vadd.f32 %v595, %v371
    %v598 = vadd.f32 %v596, %v372
    %v599 = vrot.slane %v597, 7
    %v600 = vrot.slane %v598, 7
    %v601 = vsel %vm163, %v599, %v600
    %v602 = vsel %vm163, %v600, %v599
    %v603 = vsel %vm147, %v602, 0.0
    %v604 = vsel %vm148, %v601, 0.0
    %605 = vrot.lane.b32.xlu0 %v597, 32
    %v606 = vpop.permute.xlu0 %605
    %607 = vrot.lane.b32.xlu0 %v598, 32
    %v608 = vpop.permute.xlu0 %607
    %v609 = vadd.f32 %v603, %v606
    %v610 = vadd.f32 %v604, %v608
    %v611 = vrot.slane %v597, 1
    %v612 = vrot.slane %v598, 1
    %v613 = vsel %vm176, %v611, %v612
    %v614 = vsel %vm176, %v612, %v611
    %v615 = vsel %vm155, %v613, 0.0
    %v616 = vsel %vm156, %v614, 0.0
    %617 = vrot.lane.b32.xlu0 %v615, 64
    %v618 = vpop.permute.xlu0 %617
    %619 = vrot.lane.b32.xlu0 %v616, 64
    %v620 = vpop.permute.xlu0 %619
    %v621 = vadd.f32 %v609, %v618
    %v622 = vadd.f32 %v610, %v620
    %v623 = vpack.c.bf16 %v622, %v621
    %s624 = scalar_lea.vmem [#allocation7], 256
    %v625 = vld [vmem:[%s624] sm:$0xff]
    %v626 = vld [vmem:[%s624 + $0x8] sm:$0xff]
    %v627 = vld [vmem:[%s624 + $0x10] sm:$0xff]
    %v628 = vld [vmem:[%s624 + $0x18] sm:$0xff]
    %v629 = vld [vmem:[%s624 + $0x20] sm:$0xff]
    %v630 = vld [vmem:[%s624 + $0x28] sm:$0xff]
    %v631 = vld [vmem:[%s624 + $0x30] sm:$0xff]
    %v632 = vld [vmem:[%s624 + $0x38] sm:$0xff]
    %v633 = vld [vmem:[%s624 + $0x40] sm:$0xff]
    %v634 = vld [vmem:[%s624 + $0x48] sm:$0xff]
    %v635 = vld [vmem:[%s624 + $0x50] sm:$0xff]
    %v636 = vld [vmem:[%s624 + $0x58] sm:$0xff]
    %v637 = vld [vmem:[%s624 + $0x60] sm:$0xff]
    %v638 = vld [vmem:[%s624 + $0x68] sm:$0xff]
    %v639 = vld [vmem:[%s624 + $0x70] sm:$0xff]
    %v640 = vld [vmem:[%s624 + $0x78] sm:$0xff]
    %v657 = vunpack.c.l.b16 %v625
    %v658 = vunpack.c.h.b16 %v625
    %v659 = vunpack.c.l.b16 %v626
    %v660 = vunpack.c.h.b16 %v626
    %v661 = vunpack.c.l.b16 %v627
    %v662 = vunpack.c.h.b16 %v627
    %v663 = vunpack.c.l.b16 %v628
    %v664 = vunpack.c.h.b16 %v628
    %v665 = vunpack.c.l.b16 %v629
    %v666 = vunpack.c.h.b16 %v629
    %v667 = vunpack.c.l.b16 %v630
    %v668 = vunpack.c.h.b16 %v630
    %v669 = vunpack.c.l.b16 %v631
    %v670 = vunpack.c.h.b16 %v631
    %v671 = vunpack.c.l.b16 %v632
    %v672 = vunpack.c.h.b16 %v632
    %v673 = vunpack.c.l.b16 %v633
    %v674 = vunpack.c.h.b16 %v633
    %v675 = vunpack.c.l.b16 %v634
    %v676 = vunpack.c.h.b16 %v634
    %v677 = vunpack.c.l.b16 %v635
    %v678 = vunpack.c.h.b16 %v635
    %v679 = vunpack.c.l.b16 %v636
    %v680 = vunpack.c.h.b16 %v636
    %v681 = vunpack.c.l.b16 %v637
    %v682 = vunpack.c.h.b16 %v637
    %v683 = vunpack.c.l.b16 %v638
    %v684 = vunpack.c.h.b16 %v638
    %v685 = vunpack.c.l.b16 %v639
    %v686 = vunpack.c.h.b16 %v639
    %v687 = vunpack.c.l.b16 %v640
    %v688 = vunpack.c.h.b16 %v640
    %v689 = vpack.c.b16 %v659, %v657
    %v690 = vpack.c.b16 %v660, %v658
    %v691 = vpack.c.b16 %v663, %v661
    %v692 = vpack.c.b16 %v664, %v662
    %v693 = vpack.c.b16 %v667, %v665
    %v694 = vpack.c.b16 %v668, %v666
    %v695 = vpack.c.b16 %v671, %v669
    %v696 = vpack.c.b16 %v672, %v670
    %v697 = vpack.c.b16 %v675, %v673
    %v698 = vpack.c.b16 %v676, %v674
    %v699 = vpack.c.b16 %v679, %v677
    %v700 = vpack.c.b16 %v680, %v678
    %v701 = vpack.c.b16 %v683, %v681
    %v702 = vpack.c.b16 %v684, %v682
    %v703 = vpack.c.b16 %v687, %v685
    %v704 = vpack.c.b16 %v688, %v686
    %721 = vmatpush.bf16.msra.mxu0 %v703
    %722 = vmatpush.bf16.msra.mxu0 %v701
    %723 = vmatpush.bf16.msra.mxu0 %v699
    %724 = vmatpush.bf16.msra.mxu0 %v697
    %725 = vmatpush.bf16.msra.mxu0 %v695
    %726 = vmatpush.bf16.msra.mxu0 %v693
    %727 = vmatpush.bf16.msra.mxu0 %v691
    %728 = vmatpush.bf16.msra.mxu0 %v689
    %729 = vmatmul.bf16.gmra.mxu0 %v623
    %v730 = vpop.f32.mrf.mxu0
    %v731 = vadd.f32 0.0, %v730
    %v732 = vpop.f32.mrf.mxu0
    %v733 = vadd.f32 0.0, %v732
    %734 = vdwg.mxu0
    %735 = vmatpush.bf16.msra.mxu0 %v704
    %736 = vmatpush.bf16.msra.mxu0 %v702
    %737 = vmatpush.bf16.msra.mxu0 %v700
    %738 = vmatpush.bf16.msra.mxu0 %v698
    %739 = vmatpush.bf16.msra.mxu0 %v696
    %740 = vmatpush.bf16.msra.mxu0 %v694
    %741 = vmatpush.bf16.msra.mxu0 %v692
    %742 = vmatpush.bf16.msra.mxu0 %v690
    %743 = vmatmul.bf16.gmra.mxu0 %v623
    %v744 = vpop.f32.mrf.mxu0
    %v745 = vadd.f32 0.0, %v744
    %v746 = vpop.f32.mrf.mxu0
    %v747 = vadd.f32 0.0, %v746
    %748 = vdwg.mxu0
    %s749 = scalar_lea.vmem [#allocation8], 4
    %v750 = vld [vmem:[%s749] ss:$8 sm:$0x3]
    %v752 = vperm.slane %v750, 0
    %v753 = vperm.slane %v750, 1
    %v756 = vmul.f32 %v731, %v752
    %v757 = vmul.f32 %v745, %v753
    %v758 = vmul.f32 %v733, %v752
    %v759 = vmul.f32 %v747, %v753
    %s760 = scalar_lea.vmem [#allocation8], 5
    %v761 = vld [vmem:[%s760] ss:$8 sm:$0x3]
    %v763 = vperm.slane %v761, 0
    %v764 = vperm.slane %v761, 1
    %v767 = vadd.f32 %v756, %v763
    %v768 = vadd.f32 %v757, %v764
    %v769 = vadd.f32 %v758, %v763
    %v770 = vadd.f32 %v759, %v764
    %vm771 = vcmp.ge.f32.partialorder %v767, 0.0
    %vm772 = vcmp.ge.f32.partialorder %v768, 0.0
    %vm773 = vcmp.ge.f32.partialorder %v769, 0.0
    %vm774 = vcmp.ge.f32.partialorder %v770, 0.0
    %v775 = vmul.f32 %v767, 0.2
    %v776 = vmul.f32 %v768, 0.2
    %v777 = vmul.f32 %v769, 0.2
    %v778 = vmul.f32 %v770, 0.2
    %v779 = vsel %vm771, %v767, %v775
    %v780 = vsel %vm772, %v768, %v776
    %v781 = vsel %vm773, %v769, %v777
    %v782 = vsel %vm774, %v770, %v778
    %v783 = vxor.u32 %v780, 2147483648
    %v784 = vxor.u32 %v782, 2147483648
    %v785 = vmul.f32 %v783, 1.442695
    %v786 = vpow.pop %v785
    %v787 = vmul.f32 %v784, 1.442695
    %v788 = vpow.pop %v787
    %v789 = vadd.f32 %v786, 1.0
    %v790 = vadd.f32 %v788, 1.0
    %v791 = vrcp.pop %v789
    %v792 = vmul.f32 %v789, %v791
    %v793 = vsub.f32 1.0, %v792
    %v794 = vmul.f32 %v791, %v793
    %v795 = vadd.f32 %v791, %v794
    %vm796 = vweird.f32 %v789
    %vm797 = vweird.f32 %v791
    %vm798 = vmor %vm796, %vm797
    %v799 = vsel %vm798, %v791, %v795
    %v800 = vand.u32 2147483647, %v789
    %vm801 = vcmp.eq.f32.partialorder %v800, 8.507059e+37
    %v802 = vand.u32 %v789, 2147483648
    %v803 = vor.u32 1.1754944e-38, %v802
    %v804 = vsel %vm801, %v803, %v799
    %v805 = vmul.f32 1.0, %v804
    %v806 = vrcp.pop %v790
    %v807 = vmul.f32 %v790, %v806
    %v808 = vsub.f32 1.0, %v807
    %v809 = vmul.f32 %v806, %v808
    %v810 = vadd.f32 %v806, %v809
    %vm811 = vweird.f32 %v790
    %vm812 = vweird.f32 %v806
    %vm813 = vmor %vm811, %vm812
    %v814 = vsel %vm813, %v806, %v810
    %v815 = vand.u32 2147483647, %v790
    %vm816 = vcmp.eq.f32.partialorder %v815, 8.507059e+37
    %v817 = vand.u32 %v790, 2147483648
    %v818 = vor.u32 1.1754944e-38, %v817
    %v819 = vsel %vm816, %v818, %v814
    %v820 = vmul.f32 1.0, %v819
    %v821 = vmul.f32 %v779, %v805
    %v822 = vmul.f32 %v781, %v820
    %v823 = vadd.f32 %v821, %v597
    %v824 = vadd.f32 %v822, %v598
    %v825 = vrot.slane %v823, 4
    %v826 = vadd.f32 %v823, %v825
    %v827 = vrot.slane %v826, 2
    %v828 = vadd.f32 %v826, %v827
    %v829 = vrot.slane %v828, 1
    %v830 = vadd.f32 %v828, %v829
    %v831 = vrot.slane %v824, 4
    %v832 = vadd.f32 %v824, %v831
    %v833 = vrot.slane %v832, 2
    %v834 = vadd.f32 %v832, %v833
    %v835 = vrot.slane %v834, 1
    %v836 = vadd.f32 %v834, %v835
    %v837 = vpack.c.bf16 %v830, %v830
    %v838 = vpack.c.bf16 %v836, %v836
    %v839 = vld [vmem:[#allocation10] sm:$0xf]
    %v840 = vld [vmem:[#allocation10 + $0x4] sm:$0xf]
    %v841 = vld [vmem:[#allocation10 + $0x8] sm:$0xf]
    %v842 = vld [vmem:[#allocation10 + $0xc] sm:$0xf]
    %v843 = vld [vmem:[#allocation10 + $0x10] sm:$0xf]
    %v844 = vld [vmem:[#allocation10 + $0x14] sm:$0xf]
    %v845 = vld [vmem:[#allocation10 + $0x18] sm:$0xf]
    %v846 = vld [vmem:[#allocation10 + $0x1c] sm:$0xf]
    %v847 = vld [vmem:[#allocation10 + $0x20] sm:$0xf]
    %v848 = vld [vmem:[#allocation10 + $0x24] sm:$0xf]
    %v849 = vld [vmem:[#allocation10 + $0x28] sm:$0xf]
    %v850 = vld [vmem:[#allocation10 + $0x2c] sm:$0xf]
    %v851 = vld [vmem:[#allocation10 + $0x30] sm:$0xf]
    %v852 = vld [vmem:[#allocation10 + $0x34] sm:$0xf]
    %v853 = vld [vmem:[#allocation10 + $0x38] sm:$0xf]
    %v854 = vld [vmem:[#allocation10 + $0x3c] sm:$0xf]
    %v855 = vld [vmem:[#allocation11] sm:$0x1]
    %v856 = vperm.slane %v855, 0
    %v859 = vunpack.c.l.b16 %v837
    %v860 = vunpack.c.l.b16 %v838
    %vm861 = vcmask 1041409
    %v862 = vsel %vm861, %v860, %v859
    %v863 = vpack.c.b16 %v862, %v862
    %v881 = vunpack.c.l.b16 %v839
    %v882 = vunpack.c.l.b16 %v840
    %v883 = vunpack.c.l.b16 %v841
    %v884 = vunpack.c.l.b16 %v842
    %v885 = vunpack.c.l.b16 %v843
    %v886 = vunpack.c.l.b16 %v844
    %v887 = vunpack.c.l.b16 %v845
    %v888 = vunpack.c.l.b16 %v846
    %v889 = vunpack.c.l.b16 %v847
    %v890 = vunpack.c.l.b16 %v848
    %v891 = vunpack.c.l.b16 %v849
    %v892 = vunpack.c.l.b16 %v850
    %v893 = vunpack.c.l.b16 %v851
    %v894 = vunpack.c.l.b16 %v852
    %v895 = vunpack.c.l.b16 %v853
    %v896 = vunpack.c.l.b16 %v854
    %v897 = vpack.c.b16 %v882, %v881
    %v898 = vpack.c.b16 %v884, %v883
    %v899 = vpack.c.b16 %v886, %v885
    %v900 = vpack.c.b16 %v888, %v887
    %v901 = vpack.c.b16 %v890, %v889
    %v902 = vpack.c.b16 %v892, %v891
    %v903 = vpack.c.b16 %v894, %v893
    %v904 = vpack.c.b16 %v896, %v895
    %913 = vmatpush.bf16.msra.mxu0 %v904
    %914 = vmatpush.bf16.msra.mxu0 %v903
    %915 = vmatpush.bf16.msra.mxu0 %v902
    %916 = vmatpush.bf16.msra.mxu0 %v901
    %917 = vmatpush.bf16.msra.mxu0 %v900
    %918 = vmatpush.bf16.msra.mxu0 %v899
    %919 = vmatpush.bf16.msra.mxu0 %v898
    %920 = vmatpush.bf16.msra.mxu0 %v897
    %921 = vmatmul.bf16.gmra.mxu0 %v863
    %v922 = vpop.f32.mrf.mxu0
    %v923 = vadd.f32 %v856, %v922
    %v924 = vpop.f32.mrf.mxu0
    %925 = vdwg.mxu0
    %v926 = vld [vmem:[#allocation5] sm:$0x3]
    %v927 = vpack.c.bf16 %v926, %v926
    %s928 = scalar_lea.vmem [#allocation10], 64
    %v929 = vld [vmem:[%s928] sm:$0xf]
    %v930 = vld [vmem:[%s928 + $0x4] sm:$0xf]
    %v931 = vld [vmem:[%s928 + $0x8] sm:$0xf]
    %v932 = vld [vmem:[%s928 + $0xc] sm:$0xf]
    %v933 = vld [vmem:[%s928 + $0x10] sm:$0xf]
    %v934 = vld [vmem:[%s928 + $0x14] sm:$0xf]
    %v935 = vld [vmem:[%s928 + $0x18] sm:$0xf]
    %v936 = vld [vmem:[%s928 + $0x1c] sm:$0xf]
    %v937 = vld [vmem:[%s928 + $0x20] sm:$0xf]
    %v938 = vld [vmem:[%s928 + $0x24] sm:$0xf]
    %v939 = vld [vmem:[%s928 + $0x28] sm:$0xf]
    %v940 = vld [vmem:[%s928 + $0x2c] sm:$0xf]
    %v941 = vld [vmem:[%s928 + $0x30] sm:$0xf]
    %v942 = vld [vmem:[%s928 + $0x34] sm:$0xf]
    %v943 = vld [vmem:[%s928 + $0x38] sm:$0xf]
    %v944 = vld [vmem:[%s928 + $0x3c] sm:$0xf]
    %v961 = vunpack.c.l.b16 %v929
    %v962 = vunpack.c.l.b16 %v930
    %v963 = vunpack.c.l.b16 %v931
    %v964 = vunpack.c.l.b16 %v932
    %v965 = vunpack.c.l.b16 %v933
    %v966 = vunpack.c.l.b16 %v934
    %v967 = vunpack.c.l.b16 %v935
    %v968 = vunpack.c.l.b16 %v936
    %v969 = vunpack.c.l.b16 %v937
    %v970 = vunpack.c.l.b16 %v938
    %v971 = vunpack.c.l.b16 %v939
    %v972 = vunpack.c.l.b16 %v940
    %v973 = vunpack.c.l.b16 %v941
    %v974 = vunpack.c.l.b16 %v942
    %v975 = vunpack.c.l.b16 %v943
    %v976 = vunpack.c.l.b16 %v944
    %v977 = vpack.c.b16 %v962, %v961
    %v978 = vpack.c.b16 %v964, %v963
    %v979 = vpack.c.b16 %v966, %v965
    %v980 = vpack.c.b16 %v968, %v967
    %v981 = vpack.c.b16 %v970, %v969
    %v982 = vpack.c.b16 %v972, %v971
    %v983 = vpack.c.b16 %v974, %v973
    %v984 = vpack.c.b16 %v976, %v975
    %993 = vmatpush.bf16.msra.mxu0 %v984
    %994 = vmatpush.bf16.msra.mxu0 %v983
    %995 = vmatpush.bf16.msra.mxu0 %v982
    %996 = vmatpush.bf16.msra.mxu0 %v981
    %997 = vmatpush.bf16.msra.mxu0 %v980
    %998 = vmatpush.bf16.msra.mxu0 %v979
    %999 = vmatpush.bf16.msra.mxu0 %v978
    %1000 = vmatpush.bf16.msra.mxu0 %v977
    %1001 = vmatmul.bf16.gmra.mxu0 %v927
    %v1002 = vpop.f32.mrf.mxu0
    %v1003 = vadd.f32 0.0, %v1002
    %v1004 = vpop.f32.mrf.mxu0
    %1005 = vdwg.mxu0
    %v1006 = vld [vmem:[#allocation11 + $0x1] sm:$0x1]
    %v1007 = vperm.slane %v1006, 0
    %v1008 = vmul.f32 %v1003, %v1007
    %v1009 = vld [vmem:[#allocation11 + $0x5] sm:$0x1]
    %v1010 = vperm.slane %v1009, 0
    %v1011 = vadd.f32 %v1008, %v1010
    %vm1012 = vcmp.ge.f32.partialorder %v1011, 0.0
    %v1013 = vmul.f32 %v1011, 0.2
    %v1014 = vsel %vm1012, %v1011, %v1013
    %v1015 = vpack.c.bf16 %v1014, %v1014
    %s1016 = scalar_lea.vmem [#allocation10], 128
    %v1017 = vld [vmem:[%s1016] sm:$0xf]
    %v1018 = vld [vmem:[%s1016 + $0x4] sm:$0xf]
    %v1019 = vld [vmem:[%s1016 + $0x8] sm:$0xf]
    %v1020 = vld [vmem:[%s1016 + $0xc] sm:$0xf]
    %v1021 = vld [vmem:[%s1016 + $0x10] sm:$0xf]
    %v1022 = vld [vmem:[%s1016 + $0x14] sm:$0xf]
    %v1023 = vld [vmem:[%s1016 + $0x18] sm:$0xf]
    %v1024 = vld [vmem:[%s1016 + $0x1c] sm:$0xf]
    %v1025 = vld [vmem:[%s1016 + $0x20] sm:$0xf]
    %v1026 = vld [vmem:[%s1016 + $0x24] sm:$0xf]
    %v1027 = vld [vmem:[%s1016 + $0x28] sm:$0xf]
    %v1028 = vld [vmem:[%s1016 + $0x2c] sm:$0xf]
    %v1029 = vld [vmem:[%s1016 + $0x30] sm:$0xf]
    %v1030 = vld [vmem:[%s1016 + $0x34] sm:$0xf]
    %v1031 = vld [vmem:[%s1016 + $0x38] sm:$0xf]
    %v1032 = vld [vmem:[%s1016 + $0x3c] sm:$0xf]
    %v1049 = vunpack.c.l.b16 %v1017
    %v1050 = vunpack.c.l.b16 %v1018
    %v1051 = vunpack.c.l.b16 %v1019
    %v1052 = vunpack.c.l.b16 %v1020
    %v1053 = vunpack.c.l.b16 %v1021
    %v1054 = vunpack.c.l.b16 %v1022
    %v1055 = vunpack.c.l.b16 %v1023
    %v1056 = vunpack.c.l.b16 %v1024
    %v1057 = vunpack.c.l.b16 %v1025
    %v1058 = vunpack.c.l.b16 %v1026
    %v1059 = vunpack.c.l.b16 %v1027
    %v1060 = vunpack.c.l.b16 %v1028
    %v1061 = vunpack.c.l.b16 %v1029
    %v1062 = vunpack.c.l.b16 %v1030
    %v1063 = vunpack.c.l.b16 %v1031
    %v1064 = vunpack.c.l.b16 %v1032
    %v1065 = vpack.c.b16 %v1050, %v1049
    %v1066 = vpack.c.b16 %v1052, %v1051
    %v1067 = vpack.c.b16 %v1054, %v1053
    %v1068 = vpack.c.b16 %v1056, %v1055
    %v1069 = vpack.c.b16 %v1058, %v1057
    %v1070 = vpack.c.b16 %v1060, %v1059
    %v1071 = vpack.c.b16 %v1062, %v1061
    %v1072 = vpack.c.b16 %v1064, %v1063
    %1081 = vmatpush.bf16.msra.mxu0 %v1072
    %1082 = vmatpush.bf16.msra.mxu0 %v1071
    %1083 = vmatpush.bf16.msra.mxu0 %v1070
    %1084 = vmatpush.bf16.msra.mxu0 %v1069
    %1085 = vmatpush.bf16.msra.mxu0 %v1068
    %1086 = vmatpush.bf16.msra.mxu0 %v1067
    %1087 = vmatpush.bf16.msra.mxu0 %v1066
    %1088 = vmatpush.bf16.msra.mxu0 %v1065
    %1089 = vmatmul.bf16.gmra.mxu0 %v1015
    %v1090 = vpop.f32.mrf.mxu0
    %v1091 = vadd.f32 0.0, %v1090
    %v1092 = vpop.f32.mrf.mxu0
    %1093 = vdwg.mxu0
    %v1094 = vld [vmem:[#allocation11 + $0x2] sm:$0x1]
    %v1095 = vperm.slane %v1094, 0
    %v1096 = vmul.f32 %v1091, %v1095
    %v1097 = vld [vmem:[#allocation11 + $0x6] sm:$0x1]
    %v1098 = vperm.slane %v1097, 0
    %v1099 = vadd.f32 %v1096, %v1098
    %vm1100 = vcmp.ge.f32.partialorder %v1099, 0.0
    %v1101 = vmul.f32 %v1099, 0.2
    %v1102 = vsel %vm1100, %v1099, %v1101
    %v1103 = vpack.c.bf16 %v1102, %v1102
    %s1104 = scalar_lea.vmem [#allocation10], 192
    %v1105 = vld [vmem:[%s1104] sm:$0xf]
    %v1106 = vld [vmem:[%s1104 + $0x4] sm:$0xf]
    %v1107 = vld [vmem:[%s1104 + $0x8] sm:$0xf]
    %v1108 = vld [vmem:[%s1104 + $0xc] sm:$0xf]
    %v1109 = vld [vmem:[%s1104 + $0x10] sm:$0xf]
    %v1110 = vld [vmem:[%s1104 + $0x14] sm:$0xf]
    %v1111 = vld [vmem:[%s1104 + $0x18] sm:$0xf]
    %v1112 = vld [vmem:[%s1104 + $0x1c] sm:$0xf]
    %v1113 = vld [vmem:[%s1104 + $0x20] sm:$0xf]
    %v1114 = vld [vmem:[%s1104 + $0x24] sm:$0xf]
    %v1115 = vld [vmem:[%s1104 + $0x28] sm:$0xf]
    %v1116 = vld [vmem:[%s1104 + $0x2c] sm:$0xf]
    %v1117 = vld [vmem:[%s1104 + $0x30] sm:$0xf]
    %v1118 = vld [vmem:[%s1104 + $0x34] sm:$0xf]
    %v1119 = vld [vmem:[%s1104 + $0x38] sm:$0xf]
    %v1120 = vld [vmem:[%s1104 + $0x3c] sm:$0xf]
    %v1137 = vunpack.c.l.b16 %v1105
    %v1138 = vunpack.c.l.b16 %v1106
    %v1139 = vunpack.c.l.b16 %v1107
    %v1140 = vunpack.c.l.b16 %v1108
    %v1141 = vunpack.c.l.b16 %v1109
    %v1142 = vunpack.c.l.b16 %v1110
    %v1143 = vunpack.c.l.b16 %v1111
    %v1144 = vunpack.c.l.b16 %v1112
    %v1145 = vunpack.c.l.b16 %v1113
    %v1146 = vunpack.c.l.b16 %v1114
    %v1147 = vunpack.c.l.b16 %v1115
    %v1148 = vunpack.c.l.b16 %v1116
    %v1149 = vunpack.c.l.b16 %v1117
    %v1150 = vunpack.c.l.b16 %v1118
    %v1151 = vunpack.c.l.b16 %v1119
    %v1152 = vunpack.c.l.b16 %v1120
    %v1153 = vpack.c.b16 %v1138, %v1137
    %v1154 = vpack.c.b16 %v1140, %v1139
    %v1155 = vpack.c.b16 %v1142, %v1141
    %v1156 = vpack.c.b16 %v1144, %v1143
    %v1157 = vpack.c.b16 %v1146, %v1145
    %v1158 = vpack.c.b16 %v1148, %v1147
    %v1159 = vpack.c.b16 %v1150, %v1149
    %v1160 = vpack.c.b16 %v1152, %v1151
    %1169 = vmatpush.bf16.msra.mxu0 %v1160
    %1170 = vmatpush.bf16.msra.mxu0 %v1159
    %1171 = vmatpush.bf16.msra.mxu0 %v1158
    %1172 = vmatpush.bf16.msra.mxu0 %v1157
    %1173 = vmatpush.bf16.msra.mxu0 %v1156
    %1174 = vmatpush.bf16.msra.mxu0 %v1155
    %1175 = vmatpush.bf16.msra.mxu0 %v1154
    %1176 = vmatpush.bf16.msra.mxu0 %v1153
    %1177 = vmatmul.bf16.gmra.mxu0 %v1103
    %v1178 = vpop.f32.mrf.mxu0
    %v1179 = vadd.f32 0.0, %v1178
    %v1180 = vpop.f32.mrf.mxu0
    %1181 = vdwg.mxu0
    %v1182 = vld [vmem:[#allocation11 + $0x3] sm:$0x1]
    %v1183 = vperm.slane %v1182, 0
    %v1184 = vmul.f32 %v1179, %v1183
    %v1185 = vld [vmem:[#allocation11 + $0x7] sm:$0x1]
    %v1186 = vperm.slane %v1185, 0
    %v1187 = vadd.f32 %v1184, %v1186
    %vm1188 = vcmp.ge.f32.partialorder %v1187, 0.0
    %v1189 = vmul.f32 %v1187, 0.2
    %v1190 = vsel %vm1188, %v1187, %v1189
    %v1191 = vpack.c.bf16 %v1190, %v1190
    %s1192 = scalar_lea.vmem [#allocation10], 256
    %v1193 = vld [vmem:[%s1192] sm:$0xf]
    %v1194 = vld [vmem:[%s1192 + $0x4] sm:$0xf]
    %v1195 = vld [vmem:[%s1192 + $0x8] sm:$0xf]
    %v1196 = vld [vmem:[%s1192 + $0xc] sm:$0xf]
    %v1197 = vld [vmem:[%s1192 + $0x10] sm:$0xf]
    %v1198 = vld [vmem:[%s1192 + $0x14] sm:$0xf]
    %v1199 = vld [vmem:[%s1192 + $0x18] sm:$0xf]
    %v1200 = vld [vmem:[%s1192 + $0x1c] sm:$0xf]
    %v1201 = vld [vmem:[%s1192 + $0x20] sm:$0xf]
    %v1202 = vld [vmem:[%s1192 + $0x24] sm:$0xf]
    %v1203 = vld [vmem:[%s1192 + $0x28] sm:$0xf]
    %v1204 = vld [vmem:[%s1192 + $0x2c] sm:$0xf]
    %v1205 = vld [vmem:[%s1192 + $0x30] sm:$0xf]
    %v1206 = vld [vmem:[%s1192 + $0x34] sm:$0xf]
    %v1207 = vld [vmem:[%s1192 + $0x38] sm:$0xf]
    %v1208 = vld [vmem:[%s1192 + $0x3c] sm:$0xf]
    %v1225 = vunpack.c.l.b16 %v1193
    %v1226 = vunpack.c.l.b16 %v1194
    %v1227 = vunpack.c.l.b16 %v1195
    %v1228 = vunpack.c.l.b16 %v1196
    %v1229 = vunpack.c.l.b16 %v1197
    %v1230 = vunpack.c.l.b16 %v1198
    %v1231 = vunpack.c.l.b16 %v1199
    %v1232 = vunpack.c.l.b16 %v1200
    %v1233 = vunpack.c.l.b16 %v1201
    %v1234 = vunpack.c.l.b16 %v1202
    %v1235 = vunpack.c.l.b16 %v1203
    %v1236 = vunpack.c.l.b16 %v1204
    %v1237 = vunpack.c.l.b16 %v1205
    %v1238 = vunpack.c.l.b16 %v1206
    %v1239 = vunpack.c.l.b16 %v1207
    %v1240 = vunpack.c.l.b16 %v1208
    %v1241 = vpack.c.b16 %v1226, %v1225
    %v1242 = vpack.c.b16 %v1228, %v1227
    %v1243 = vpack.c.b16 %v1230, %v1229
    %v1244 = vpack.c.b16 %v1232, %v1231
    %v1245 = vpack.c.b16 %v1234, %v1233
    %v1246 = vpack.c.b16 %v1236, %v1235
    %v1247 = vpack.c.b16 %v1238, %v1237
    %v1248 = vpack.c.b16 %v1240, %v1239
    %1257 = vmatpush.bf16.msra.mxu0 %v1248
    %1258 = vmatpush.bf16.msra.mxu0 %v1247
    %1259 = vmatpush.bf16.msra.mxu0 %v1246
    %1260 = vmatpush.bf16.msra.mxu0 %v1245
    %1261 = vmatpush.bf16.msra.mxu0 %v1244
    %1262 = vmatpush.bf16.msra.mxu0 %v1243
    %1263 = vmatpush.bf16.msra.mxu0 %v1242
    %1264 = vmatpush.bf16.msra.mxu0 %v1241
    %1265 = vmatmul.bf16.gmra.mxu0 %v1191
    %v1266 = vpop.f32.mrf.mxu0
    %v1267 = vadd.f32 0.0, %v1266
    %v1268 = vpop.f32.mrf.mxu0
    %1269 = vdwg.mxu0
    %v1270 = vld [vmem:[#allocation11 + $0x4] sm:$0x1]
    %v1271 = vperm.slane %v1270, 0
    %v1272 = vmul.f32 %v1267, %v1271
    %v1273 = vld [vmem:[#allocation11 + $0x8] sm:$0x1]
    %v1274 = vperm.slane %v1273, 0
    %v1275 = vadd.f32 %v1272, %v1274
    %v1276 = vpack.c.bf16 %v923, %v923
    %s1277 = scalar_lea.vmem [#allocation10], 320
    %v1278 = vld [vmem:[%s1277] sm:$0xf]
    %v1279 = vld [vmem:[%s1277 + $0x4] sm:$0xf]
    %v1280 = vld [vmem:[%s1277 + $0x8] sm:$0xf]
    %v1281 = vld [vmem:[%s1277 + $0xc] sm:$0xf]
    %v1282 = vld [vmem:[%s1277 + $0x10] sm:$0xf]
    %v1283 = vld [vmem:[%s1277 + $0x14] sm:$0xf]
    %v1284 = vld [vmem:[%s1277 + $0x18] sm:$0xf]
    %v1285 = vld [vmem:[%s1277 + $0x1c] sm:$0xf]
    %v1286 = vld [vmem:[%s1277 + $0x20] sm:$0xf]
    %v1287 = vld [vmem:[%s1277 + $0x24] sm:$0xf]
    %v1288 = vld [vmem:[%s1277 + $0x28] sm:$0xf]
    %v1289 = vld [vmem:[%s1277 + $0x2c] sm:$0xf]
    %v1290 = vld [vmem:[%s1277 + $0x30] sm:$0xf]
    %v1291 = vld [vmem:[%s1277 + $0x34] sm:$0xf]
    %v1292 = vld [vmem:[%s1277 + $0x38] sm:$0xf]
    %v1293 = vld [vmem:[%s1277 + $0x3c] sm:$0xf]
    %v1294 = vpack.c.bf16 %v1275, %v1275
    %s1295 = scalar_lea.vmem [#allocation10], 384
    %v1296 = vld [vmem:[%s1295] sm:$0xf]
    %v1297 = vld [vmem:[%s1295 + $0x4] sm:$0xf]
    %v1298 = vld [vmem:[%s1295 + $0x8] sm:$0xf]
    %v1299 = vld [vmem:[%s1295 + $0xc] sm:$0xf]
    %v1300 = vld [vmem:[%s1295 + $0x10] sm:$0xf]
    %v1301 = vld [vmem:[%s1295 + $0x14] sm:$0xf]
    %v1302 = vld [vmem:[%s1295 + $0x18] sm:$0xf]
    %v1303 = vld [vmem:[%s1295 + $0x1c] sm:$0xf]
    %v1304 = vld [vmem:[%s1295 + $0x20] sm:$0xf]
    %v1305 = vld [vmem:[%s1295 + $0x24] sm:$0xf]
    %v1306 = vld [vmem:[%s1295 + $0x28] sm:$0xf]
    %v1307 = vld [vmem:[%s1295 + $0x2c] sm:$0xf]
    %v1308 = vld [vmem:[%s1295 + $0x30] sm:$0xf]
    %v1309 = vld [vmem:[%s1295 + $0x34] sm:$0xf]
    %v1310 = vld [vmem:[%s1295 + $0x38] sm:$0xf]
    %v1311 = vld [vmem:[%s1295 + $0x3c] sm:$0xf]
    %v1328 = vunpack.c.l.b16 %v1296
    %v1329 = vunpack.c.l.b16 %v1297
    %v1330 = vunpack.c.l.b16 %v1298
    %v1331 = vunpack.c.l.b16 %v1299
    %v1332 = vunpack.c.l.b16 %v1300
    %v1333 = vunpack.c.l.b16 %v1301
    %v1334 = vunpack.c.l.b16 %v1302
    %v1335 = vunpack.c.l.b16 %v1303
    %v1336 = vunpack.c.l.b16 %v1304
    %v1337 = vunpack.c.l.b16 %v1305
    %v1338 = vunpack.c.l.b16 %v1306
    %v1339 = vunpack.c.l.b16 %v1307
    %v1340 = vunpack.c.l.b16 %v1308
    %v1341 = vunpack.c.l.b16 %v1309
    %v1342 = vunpack.c.l.b16 %v1310
    %v1343 = vunpack.c.l.b16 %v1311
    %v1344 = vpack.c.b16 %v1329, %v1328
    %v1345 = vpack.c.b16 %v1331, %v1330
    %v1346 = vpack.c.b16 %v1333, %v1332
    %v1347 = vpack.c.b16 %v1335, %v1334
    %v1348 = vpack.c.b16 %v1337, %v1336
    %v1349 = vpack.c.b16 %v1339, %v1338
    %v1350 = vpack.c.b16 %v1341, %v1340
    %v1351 = vpack.c.b16 %v1343, %v1342
    %1360 = vmatpush.bf16.msra.mxu0 %v1351
    %1361 = vmatpush.bf16.msra.mxu0 %v1350
    %1362 = vmatpush.bf16.msra.mxu0 %v1349
    %1363 = vmatpush.bf16.msra.mxu0 %v1348
    %1364 = vmatpush.bf16.msra.mxu0 %v1347
    %1365 = vmatpush.bf16.msra.mxu0 %v1346
    %1366 = vmatpush.bf16.msra.mxu0 %v1345
    %1367 = vmatpush.bf16.msra.mxu0 %v1344
    %1368 = vmatmul.bf16.gmra.mxu0 %v1294
    %v1369 = vpop.f32.mrf.mxu0
    %v1370 = vadd.f32 0.0, %v1369
    %v1371 = vpop.f32.mrf.mxu0
    %1372 = vdwg.mxu0
    %v1389 = vunpack.c.l.b16 %v1278
    %v1390 = vunpack.c.l.b16 %v1279
    %v1391 = vunpack.c.l.b16 %v1280
    %v1392 = vunpack.c.l.b16 %v1281
    %v1393 = vunpack.c.l.b16 %v1282
    %v1394 = vunpack.c.l.b16 %v1283
    %v1395 = vunpack.c.l.b16 %v1284
    %v1396 = vunpack.c.l.b16 %v1285
    %v1397 = vunpack.c.l.b16 %v1286
    %v1398 = vunpack.c.l.b16 %v1287
    %v1399 = vunpack.c.l.b16 %v1288
    %v1400 = vunpack.c.l.b16 %v1289
    %v1401 = vunpack.c.l.b16 %v1290
    %v1402 = vunpack.c.l.b16 %v1291
    %v1403 = vunpack.c.l.b16 %v1292
    %v1404 = vunpack.c.l.b16 %v1293
    %v1405 = vpack.c.b16 %v1390, %v1389
    %v1406 = vpack.c.b16 %v1392, %v1391
    %v1407 = vpack.c.b16 %v1394, %v1393
    %v1408 = vpack.c.b16 %v1396, %v1395
    %v1409 = vpack.c.b16 %v1398, %v1397
    %v1410 = vpack.c.b16 %v1400, %v1399
    %v1411 = vpack.c.b16 %v1402, %v1401
    %v1412 = vpack.c.b16 %v1404, %v1403
    %1421 = vmatpush.bf16.msra.mxu0 %v1412
    %1422 = vmatpush.bf16.msra.mxu0 %v1411
    %1423 = vmatpush.bf16.msra.mxu0 %v1410
    %1424 = vmatpush.bf16.msra.mxu0 %v1409
    %1425 = vmatpush.bf16.msra.mxu0 %v1408
    %1426 = vmatpush.bf16.msra.mxu0 %v1407
    %1427 = vmatpush.bf16.msra.mxu0 %v1406
    %1428 = vmatpush.bf16.msra.mxu0 %v1405
    %1429 = vmatmul.bf16.gmra.mxu0 %v1276
    %v1430 = vpop.f32.mrf.mxu0
    %v1431 = vadd.f32 %v1370, %v1430
    %v1432 = vpop.f32.mrf.mxu0
    %1433 = vdwg.mxu0
    %v1434 = vld [vmem:[#allocation11 + $0x9] sm:$0x1]
    %v1435 = vperm.slane %v1434, 0
    %v1436 = vmul.f32 %v1431, %v1435
    %v1437 = vld [vmem:[#allocation11 + $0xa] sm:$0x1]
    %v1438 = vperm.slane %v1437, 0
    %v1439 = vadd.f32 %v1436, %v1438
    %vm1440 = vcmp.ge.f32.partialorder %v1439, 0.0
    %v1441 = vmul.f32 %v1439, 0.2
    %v1442 = vsel %vm1440, %v1439, %v1441
    %v1443 = vpack.c.bf16 %v1442, %v1442
    %s1444 = scalar_lea.vmem [#allocation10], 448
    %v1445 = vld [vmem:[%s1444] sm:$0xf]
    %v1446 = vld [vmem:[%s1444 + $0x4] sm:$0xf]
    %v1447 = vld [vmem:[%s1444 + $0x8] sm:$0xf]
    %v1448 = vld [vmem:[%s1444 + $0xc] sm:$0xf]
    %v1449 = vld [vmem:[%s1444 + $0x10] sm:$0xf]
    %v1450 = vld [vmem:[%s1444 + $0x14] sm:$0xf]
    %v1451 = vld [vmem:[%s1444 + $0x18] sm:$0xf]
    %v1452 = vld [vmem:[%s1444 + $0x1c] sm:$0xf]
    %v1453 = vld [vmem:[%s1444 + $0x20] sm:$0xf]
    %v1454 = vld [vmem:[%s1444 + $0x24] sm:$0xf]
    %v1455 = vld [vmem:[%s1444 + $0x28] sm:$0xf]
    %v1456 = vld [vmem:[%s1444 + $0x2c] sm:$0xf]
    %v1457 = vld [vmem:[%s1444 + $0x30] sm:$0xf]
    %v1458 = vld [vmem:[%s1444 + $0x34] sm:$0xf]
    %v1459 = vld [vmem:[%s1444 + $0x38] sm:$0xf]
    %v1460 = vld [vmem:[%s1444 + $0x3c] sm:$0xf]
    %v1461 = vld [vmem:[#allocation11 + $0xb] sm:$0x1]
    %v1462 = vperm.slane %v1461, 0
    %v1479 = vunpack.c.l.b16 %v1445
    %v1480 = vunpack.c.l.b16 %v1446
    %v1481 = vunpack.c.l.b16 %v1447
    %v1482 = vunpack.c.l.b16 %v1448
    %v1483 = vunpack.c.l.b16 %v1449
    %v1484 = vunpack.c.l.b16 %v1450
    %v1485 = vunpack.c.l.b16 %v1451
    %v1486 = vunpack.c.l.b16 %v1452
    %v1487 = vunpack.c.l.b16 %v1453
    %v1488 = vunpack.c.l.b16 %v1454
    %v1489 = vunpack.c.l.b16 %v1455
    %v1490 = vunpack.c.l.b16 %v1456
    %v1491 = vunpack.c.l.b16 %v1457
    %v1492 = vunpack.c.l.b16 %v1458
    %v1493 = vunpack.c.l.b16 %v1459
    %v1494 = vunpack.c.l.b16 %v1460
    %v1495 = vpack.c.b16 %v1480, %v1479
    %v1496 = vpack.c.b16 %v1482, %v1481
    %v1497 = vpack.c.b16 %v1484, %v1483
    %v1498 = vpack.c.b16 %v1486, %v1485
    %v1499 = vpack.c.b16 %v1488, %v1487
    %v1500 = vpack.c.b16 %v1490, %v1489
    %v1501 = vpack.c.b16 %v1492, %v1491
    %v1502 = vpack.c.b16 %v1494, %v1493
    %1511 = vmatpush.bf16.msra.mxu0 %v1502
    %1512 = vmatpush.bf16.msra.mxu0 %v1501
    %1513 = vmatpush.bf16.msra.mxu0 %v1500
    %1514 = vmatpush.bf16.msra.mxu0 %v1499
    %1515 = vmatpush.bf16.msra.mxu0 %v1498
    %1516 = vmatpush.bf16.msra.mxu0 %v1497
    %1517 = vmatpush.bf16.msra.mxu0 %v1496
    %1518 = vmatpush.bf16.msra.mxu0 %v1495
    %1519 = vmatmul.bf16.gmra.mxu0 %v1443
    %v1520 = vpop.f32.mrf.mxu0
    %v1521 = vadd.f32 %v1462, %v1520
    %v1522 = vpop.f32.mrf.mxu0
    %1523 = vdwg.mxu0
    %1524 = vst [vmem:[#allocation13] sm:$0x3] %v1521
    // Predicated region
    $region50: #{tpu_custom_call.1} parent=1 // pred_check
      _
    $region51: #{tpu_custom_call.1} parent=1 // pred_check_branch
      %1526 = sbr.rel (0) target = $region53
    $region52: #{tpu_custom_call.1} parent=1 // pred_region
      %1528 = vsyncadd [#allocation4], 0
      %s1530 = sshll.u32 [#allocation13], 4
      %s1531 = int_to_ptr.vmem [resolvable:$true] %s1530
      %s1532 = sshll.u32 %s6, 4
      %s1533 = int_to_ptr.hbm [resolvable:$true] %s1532
      %1535 = dma.vmem_to_hbm [thread:$0]  %s1531, 32, %s1533, [#allocation4]
    $region53: #{tpu_custom_call.1} parent=1 // pred_fallthru
      _
    // Predicated region
    $region54: #{tpu_custom_call.1} parent=1 // pred_check
      _
    $region55: #{tpu_custom_call.1} parent=1 // pred_check_branch
      %1537 = sbr.rel (0) target = $region57
    $region56: #{tpu_custom_call.1} parent=1 // pred_region
      %1539 = dma.done [#allocation4], 32
    $region57: #{tpu_custom_call.1} parent=1 // pred_fallthru
      _
    %1540 = vsyncpa [#allocation3], 1
    %1541 = vsyncpa [#allocation6], 1
    %1542 = vsyncpa [#allocation9], 1
    %1543 = vsyncpa [#allocation12], 1
    %1544 = vsyncpa [#allocation4], 1

</llo_original>
